<compile_context>
chip_gen: v5e
topology: v5e:2x2
jax: 0.10.0
libtpu: 0.0.40
codegen_flags: <defaults>
</compile_context>

<pallas_src>
import jax
import jax.numpy as jnp
from jax.experimental import pallas as pl
from jax.experimental.pallas import tpu as pltpu


# --------------------------------------------------------------------------- #
# Pallas kernel: the whole forward pass for one batch block.                   #
# --------------------------------------------------------------------------- #
def _critic_kernel(x_ref, wpre_ref, wfc_ref, small_ref, out_ref):
    # x_ref:     (bb, 6*S)    flattened inputs (channel-major, same memory as torch NCS)
    # wpre_ref:  (6*S, F)     f32 Toeplitz/block weight: conv taps + scalar-FC weights
    # wfc_ref:   (F, n_fc1)   bf16 fullyConnected weight, pre-transposed
    # small_ref: (4, F)       row0 = b_pre, row1 = b_fc (padded), row2 = w_out (padded),
    #                         row3[0] = b_out
    # out_ref:   (1, bb)      lane-dense output row
    n_fc1 = wfc_ref.shape[1]

    x = x_ref[...]                                            # (bb, 6*S) f32
    small = small_ref[...]                                    # (4, F) f32
    bpre = small[0:1, :]                                      # (1, F)
    bfc = small[1:2, :n_fc1]                                  # (1, n_fc1)
    wout = small[2:3, :n_fc1]                                 # (1, n_fc1)
    bout = small[3:4, 0:1]                                    # (1, 1)

    # Pre-layer: all conv branches + scalar FC branches as one (small-K) MXU dot.
    z = jnp.dot(x, wpre_ref[...], preferred_element_type=jnp.float32) + bpre
    feat = jnp.maximum(z, 0.0)                                # (bb, F) f32

    # fullyConnected: single K=F MXU dot with bf16 operands, f32 accumulation.
    h = jnp.dot(feat.astype(jnp.bfloat16), wfc_ref[...],
                preferred_element_type=jnp.float32) + bfc
    h = jnp.maximum(h, 0.0)                                   # (bb, n_fc1) f32

    # outputLayer (N=1): VPU multiply + lane reduction, stored as a lane-dense row.
    val = jnp.sum(h * wout, axis=-1)                          # (bb,)
    out_ref[...] = val[None, :] + bout                        # (1, bb)


# --------------------------------------------------------------------------- #
# One-time parameter packing (hoisted out of the per-call wrapper).            #
# --------------------------------------------------------------------------- #
def prepare_params(params, state_dim, action_dim):
    S = state_dim[1]
    K = 4
    L1 = S - K + 1
    L2 = action_dim - K + 1
    assert L1 > 0 and L2 > 0, "state_dim[1] and action_dim must be >= 4"

    Cv = params["tW"].shape[0]          # n_conv
    Cs = params["bitrateW"].shape[0]    # n_fc
    n_fc1, F = params["fcW"].shape
    assert F == 2 * Cs + 2 * Cv * L1 + Cv * L2 + Cs
    assert n_fc1 <= F

    def conv_toeplitz(w_ck, L, in_len):
        # w_ck: (C, K). Returns (in_len, C*L): block[s, c*L + p] = w_ck[c, s-p]
        # for 0 <= s-p < K, else 0.  Column order c*L + p matches torch's
        # channel-major flatten of the (B, C, L) conv output.
        C, Kk = w_ck.shape
        s = jnp.arange(in_len)[:, None]
        p = jnp.arange(L)[None, :]
        k = s - p                                             # (in_len, L)
        valid = (k >= 0) & (k < Kk)
        gathered = w_ck[:, jnp.clip(k, 0, Kk - 1)]            # (C, in_len, L)
        block = jnp.where(valid[None], gathered, 0.0)
        return block.transpose(1, 0, 2).reshape(in_len, C * L)

    P = 6 * S
    wpre = jnp.zeros((P, F), jnp.float32)

    # Scalar Linear(1, Cs) branches act on the last timestep of channels 0, 1, 5.
    wpre = wpre.at[S - 1, 0:Cs].set(params["bitrateW"][:, 0])
    wpre = wpre.at[2 * S - 1, Cs:2 * Cs].set(params["bufferW"][:, 0])

    off = 2 * Cs
    t_block = conv_toeplitz(params["tW"][:, 0, :], L1, S)
    wpre = wpre.at[2 * S:3 * S, off:off + Cv * L1].set(t_block)
    off += Cv * L1
    d_block = conv_toeplitz(params["dW"][:, 0, :], L1, S)
    wpre = wpre.at[3 * S:4 * S, off:off + Cv * L1].set(d_block)
    off += Cv * L1
    c_block = conv_toeplitz(params["cW"][:, 0, :], L2, action_dim)
    wpre = wpre.at[4 * S:4 * S + action_dim, off:off + Cv * L2].set(c_block)
    off += Cv * L2
    wpre = wpre.at[6 * S - 1, off:off + Cs].set(params["leftW"][:, 0])
    off += Cs
    assert off == F

    # Pre-layer bias in the same column order as the torch concat.
    bpre = jnp.concatenate([
        params["bitrateB"], params["bufferB"],
        jnp.repeat(params["tB"], L1), jnp.repeat(params["dB"], L1),
        jnp.repeat(params["cB"], L2), params["leftB"]]).astype(jnp.float32)

    # bf16 weight for the dominant dot (f32 accumulation inside the kernel).
    wfc = params["fcW"].T.astype(jnp.bfloat16)                # (F, n_fc1)

    small = jnp.zeros((4, F), jnp.float32)
    small = small.at[0, :].set(bpre)
    small = small.at[1, :n_fc1].set(params["fcB"])
    small = small.at[2, :n_fc1].set(params["outW"][0])
    small = small.at[3, 0].set(params["outB"][0])

    return {"wpre": wpre, "wfc": wfc, "small": small}


def _batch_block(B):
    # Small batches: a single grid step, rows padded to the 8-sublane granule.
    if B <= 512:
        return max(8, -(-B // 8) * 8)
    # Large batches: (8,128)-aligned block, grid >= 2 so the "parallel" batch axis
    # can shard across both v7x TensorCores; the (bb, F) f32 intermediate is 2 MiB,
    # well inside v5e's 16 MiB default scoped VMEM.
    return 256


# --------------------------------------------------------------------------- #
# Per-call wrapper: pad/reshape input + pallas_call (jitted; no weight work).  #
# --------------------------------------------------------------------------- #
@jax.jit
def critic_forward(prepared, inputs):
    wpre, wfc, small = prepared["wpre"], prepared["wfc"], prepared["small"]
    B = inputs.shape[0]
    P, F = wpre.shape
    n_fc1 = wfc.shape[1]

    x = inputs.reshape(B, -1).astype(jnp.float32)             # (B, 6*S) contiguous
    assert x.shape[1] == P

    bb = _batch_block(B)
    B_pad = -(-B // bb) * bb
    if B_pad != B:
        x = jnp.pad(x, ((0, B_pad - B), (0, 0)))              # zero rows, sliced off below
    grid = (B_pad // bb,)

    out = pl.pallas_call(
        _critic_kernel,
        out_shape=jax.ShapeDtypeStruct((1, B_pad), jnp.float32),
        grid=grid,
        in_specs=[
            pl.BlockSpec((bb, P), lambda i: (i, 0)),          # x: tiled over batch
            pl.BlockSpec((P, F), lambda i: (0, 0)),           # W_pre: resident
            pl.BlockSpec((F, n_fc1), lambda i: (0, 0)),       # W_fc (bf16): resident
            pl.BlockSpec((4, F), lambda i: (0, 0)),           # small pack: resident
        ],
        out_specs=pl.BlockSpec((1, bb), lambda i: (0, i)),    # lane-dense output row
        compiler_params=pltpu.CompilerParams(
            dimension_semantics=("parallel",)),
    )(x, wpre, wfc, small)

    return out.reshape(B_pad, 1)[:B]                          # (B, 1), drop padded rows


# --------------------------------------------------------------------------- #
# Deterministic parameter init (shapes from CriticNetwork.__init__).           #
# --------------------------------------------------------------------------- #
def _xavier_uniform(key, shape, fan_in, fan_out):
    limit = (6.0 / (fan_in + fan_out)) ** 0.5
    return jax.random.uniform(key, shape, jnp.float32, -limit, limit)


def _xavier_normal(key, shape, fan_in, fan_out):
    std = (2.0 / (fan_in + fan_out)) ** 0.5
    return std * jax.random.normal(key, shape, jnp.float32)


def init_params(key, state_dim, action_dim, n_conv=128, n_fc=128, n_fc1=128):
    S = state_dim[1]
    F = 2 * n_conv * (S - 4 + 1) + 3 * n_fc + n_conv * (action_dim - 4 + 1)
    keys = jax.random.split(key, 9)
    p = {
        "tW": _xavier_uniform(keys[0], (n_conv, 1, 4), 4, n_conv * 4),
        "tB": jnp.zeros((n_conv,), jnp.float32),
        "dW": _xavier_uniform(keys[1], (n_conv, 1, 4), 4, n_conv * 4),
        "dB": jnp.zeros((n_conv,), jnp.float32),
        "cW": _xavier_normal(keys[2], (n_conv, 1, 4), 4, n_conv * 4),
        "cB": jnp.zeros((n_conv,), jnp.float32),
        "bufferW": _xavier_uniform(keys[3], (n_fc, 1), 1, n_fc),
        "bufferB": jnp.zeros((n_fc,), jnp.float32),
        "leftW": _xavier_uniform(keys[4], (n_fc, 1), 1, n_fc),
        "leftB": jnp.zeros((n_fc,), jnp.float32),
        "bitrateW": _xavier_uniform(keys[5], (n_fc, 1), 1, n_fc),
        "bitrateB": jnp.zeros((n_fc,), jnp.float32),
        "fcW": _xavier_uniform(keys[6], (n_fc1, F), F, n_fc1),
        "fcB": jnp.zeros((n_fc1,), jnp.float32),
        # outputLayer keeps PyTorch's default (non-xavier) init; deterministic here.
        "outW": jax.random.uniform(keys[7], (1, n_fc1), jnp.float32,
                                   -1.0 / n_fc1 ** 0.5, 1.0 / n_fc1 ** 0.5),
        "outB": jax.random.uniform(keys[8], (1,), jnp.float32,
                                   -1.0 / n_fc1 ** 0.5, 1.0 / n_fc1 ** 0.5),
    }
    return p


# --------------------------------------------------------------------------- #
# Plain-JAX f32 reference (mirrors the PyTorch forward 1:1) for verification.  #
# --------------------------------------------------------------------------- #
def critic_forward_ref(params, inputs, action_dim):
    B, _, S = inputs.shape

    def lin(x, W, b):
        return jnp.maximum(x @ W.T + b, 0.0)

    def conv1d_relu(sig, W, b):          # sig (B, len), W (C,1,K), b (C,)
        Kk = W.shape[2]
        L = sig.shape[1] - Kk + 1
        cols = jnp.stack([sig[:, k:k + L] for k in range(Kk)], axis=-1)   # (B,L,K)
        out = jnp.einsum("blk,ck->bcl", cols, W[:, 0, :]) + b[None, :, None]
        return jnp.maximum(out, 0.0)                                       # (B,C,L)

    bitrate = lin(inputs[:, 0:1, -1], params["bitrateW"], params["bitrateB"])
    buffer_ = lin(inputs[:, 1:2, -1], params["bufferW"], params["bufferB"])
    t = conv1d_relu(inputs[:, 2, :], params["tW"], params["tB"])
    d = conv1d_relu(inputs[:, 3, :], params["dW"], params["dB"])
    c = conv1d_relu(inputs[:, 4, :action_dim], params["cW"], params["cB"])
    left = lin(inputs[:, 5:6, -1], params["leftW"], params["leftB"])

    feat = jnp.concatenate(
        [bitrate, buffer_, t.reshape(B, -1), d.reshape(B, -1), c.reshape(B, -1), left],
        axis=1)
    fc = jnp.maximum(feat @ params["fcW"].T + params["fcB"], 0.0)
    return fc @ params["outW"].T + params["outB"]


if __name__ == "__main__":
    B = 2
    state_dim = (6, 8)      # 6 input channels, sequence length S = 8
    action_dim = 6
    n_conv = n_fc = n_fc1 = 128

    key = jax.random.PRNGKey(0)
    k_in, k_par = jax.random.split(key)
    inputs = jax.random.normal(k_in, (B, state_dim[0], state_dim[1]), jnp.float32)
    params = init_params(k_par, state_dim, action_dim, n_conv, n_fc, n_fc1)

    prepared = prepare_params(params, state_dim, action_dim)   # one-time packing
    out = critic_forward(prepared, inputs)
    out = jax.block_until_ready(out)

    ref = critic_forward_ref(params, inputs, action_dim)
    assert out.shape == (B, 1), out.shape
    # Tolerance relaxed vs pure-f32 because the dominant dot uses bf16 operands
    # (f32 accumulation); expected error is ~1e-4 at these magnitudes.
    assert jnp.allclose(out, ref, atol=5e-3, rtol=5e-3), (out, ref)
    print("KERNEL_OK")
</pallas_src>

<mosaic_0001>
module attributes {stable_mosaic.version = 11 : i64} {
  func.func @_critic_kernel(%arg0: i32, %arg1: memref<8x48xf32, #tpu.memory_space<vmem>>, %arg2: memref<48x2048xf32, #tpu.memory_space<vmem>>, %arg3: memref<2048x128xbf16, #tpu.memory_space<vmem>>, %arg4: memref<4x2048xf32, #tpu.memory_space<vmem>>, %arg5: memref<1x8xf32, #tpu.memory_space<vmem>>) attributes {dimension_semantics = [#tpu.dimension_semantics<parallel>], iteration_bounds = array<i64: 1>, scalar_prefetch = 0 : i64, scratch_operands = 0 : i64, tpu.core_type = #tpu.core_type<tc>, window_params = [{transform_indices = @transform_0, window_bounds = array<i64: 8, 48>}, {pipeline_mode = #tpu.pipeline_mode<synchronous>, transform_indices = @transform_1, window_bounds = array<i64: 48, 2048>}, {pipeline_mode = #tpu.pipeline_mode<synchronous>, transform_indices = @transform_2, window_bounds = array<i64: 2048, 128>}, {pipeline_mode = #tpu.pipeline_mode<synchronous>, transform_indices = @transform_3, window_bounds = array<i64: 4, 2048>}, {transform_indices = @transform_4, window_bounds = array<i64: 1, 8>}]} {
    %c0 = arith.constant 0 : index
    %c0_0 = arith.constant 0 : index
    %0 = vector.load %arg1[%c0, %c0_0] : memref<8x48xf32, #tpu.memory_space<vmem>>, vector<8x48xf32>
    %c0_1 = arith.constant 0 : index
    %c0_2 = arith.constant 0 : index
    %1 = vector.load %arg4[%c0_1, %c0_2] : memref<4x2048xf32, #tpu.memory_space<vmem>>, vector<4x2048xf32>
    %2 = vector.extract_strided_slice %1 {offsets = [0, 0], sizes = [1, 2048], strides = [1, 1]} : vector<4x2048xf32> to vector<1x2048xf32>
    %3 = vector.extract_strided_slice %1 {offsets = [1, 0], sizes = [1, 128], strides = [1, 1]} : vector<4x2048xf32> to vector<1x128xf32>
    %4 = vector.extract_strided_slice %1 {offsets = [2, 0], sizes = [1, 128], strides = [1, 1]} : vector<4x2048xf32> to vector<1x128xf32>
    %5 = vector.extract_strided_slice %1 {offsets = [3, 0], sizes = [1, 1], strides = [1, 1]} : vector<4x2048xf32> to vector<1x1xf32>
    %c0_3 = arith.constant 0 : index
    %c0_4 = arith.constant 0 : index
    %6 = vector.load %arg2[%c0_3, %c0_4] : memref<48x2048xf32, #tpu.memory_space<vmem>>, vector<48x2048xf32>
    %cst = arith.constant dense<0.000000e+00> : vector<8x2048xf32>
    %7 = tpu.matmul %0, %6, %cst {dimension_numbers = #tpu.dot_dimension_numbers<[1], [0], [0], [1], [0, 0, 1, 1], [], []>} : vector<8x48xf32>, vector<48x2048xf32>, vector<8x2048xf32> -> vector<8x2048xf32>
    %8 = vector.broadcast %2 : vector<1x2048xf32> to vector<8x2048xf32>
    %9 = arith.addf %7, %8 : vector<8x2048xf32>
    %cst_5 = arith.constant 0.000000e+00 : f32
    %10 = vector.broadcast %cst_5 : f32 to vector<8x2048xf32>
    %11 = arith.maximumf %9, %10 : vector<8x2048xf32>
    %12 = arith.truncf %11 : vector<8x2048xf32> to vector<8x2048xbf16>
    %c0_6 = arith.constant 0 : index
    %c0_7 = arith.constant 0 : index
    %13 = vector.load %arg3[%c0_6, %c0_7] : memref<2048x128xbf16, #tpu.memory_space<vmem>>, vector<2048x128xbf16>
    %cst_8 = arith.constant dense<0.000000e+00> : vector<8x128xf32>
    %14 = tpu.matmul %12, %13, %cst_8 {dimension_numbers = #tpu.dot_dimension_numbers<[1], [0], [0], [1], [0, 0, 1, 1], [], []>} : vector<8x2048xbf16>, vector<2048x128xbf16>, vector<8x128xf32> -> vector<8x128xf32>
    %15 = vector.broadcast %3 : vector<1x128xf32> to vector<8x128xf32>
    %16 = arith.addf %14, %15 : vector<8x128xf32>
    %cst_9 = arith.constant 0.000000e+00 : f32
    %17 = vector.broadcast %cst_9 : f32 to vector<8x128xf32>
    %18 = arith.maximumf %16, %17 : vector<8x128xf32>
    %19 = vector.broadcast %4 : vector<1x128xf32> to vector<8x128xf32>
    %20 = arith.mulf %18, %19 : vector<8x128xf32>
    %cst_10 = arith.constant dense<0.000000e+00> : vector<8xf32>
    %21 = vector.multi_reduction <add>, %20, %cst_10 [1] : vector<8x128xf32> to vector<8xf32>
    %22 = vector.shape_cast %21 : vector<8xf32> to vector<1x8xf32>
    %23 = vector.broadcast %5 : vector<1x1xf32> to vector<1x8xf32>
    %24 = arith.addf %22, %23 : vector<1x8xf32>
    %c0_11 = arith.constant 0 : index
    %c0_12 = arith.constant 0 : index
    %25 = vector.load %arg5[%c0_11, %c0_12] : memref<1x8xf32, #tpu.memory_space<vmem>>, vector<1x8xf32>
    tpu.vector_store %arg5[%c0_11, %c0_12], %24 {strides = array<i32>} : memref<1x8xf32, #tpu.memory_space<vmem>>, vector<1x8xf32>,
    return
  }
  func.func @transform_0(%arg0: i32) -> (i32, i32) {
    %c0_i32 = arith.constant 0 : i32
    %c0_i32_0 = arith.constant 0 : i32
    return %arg0, %c0_i32 : i32, i32
  }
  func.func @transform_1(%arg0: i32) -> (i32, i32) {
    %c0_i32 = arith.constant 0 : i32
    %c0_i32_0 = arith.constant 0 : i32
    %c0_i32_1 = arith.constant 0 : i32
    return %c0_i32, %c0_i32_0 : i32, i32
  }
  func.func @transform_2(%arg0: i32) -> (i32, i32) {
    %c0_i32 = arith.constant 0 : i32
    %c0_i32_0 = arith.constant 0 : i32
    %c0_i32_1 = arith.constant 0 : i32
    return %c0_i32, %c0_i32_0 : i32, i32
  }
  func.func @transform_3(%arg0: i32) -> (i32, i32) {
    %c0_i32 = arith.constant 0 : i32
    %c0_i32_0 = arith.constant 0 : i32
    %c0_i32_1 = arith.constant 0 : i32
    return %c0_i32, %c0_i32_0 : i32, i32
  }
  func.func @transform_4(%arg0: i32) -> (i32, i32) {
    %c0_i32 = arith.constant 0 : i32
    %c0_i32_0 = arith.constant 0 : i32
    return %c0_i32, %arg0 : i32, i32
  }
}

</mosaic_0001>

<llo_original>
// kernel: critic_forward.1
$region0: #{critic_forward.1}
  #allocation0 [shape = 'u32[]', space=smem, size = 0x4, offset = 0x4, fixed_abs, tag = 'smem constant byte address 0x4 - core index']
  #allocation1 [shape = 'u32[72,128]{1,0:T(1,128)}', space=vmem, size = 0x9000, scoped, tag = 'internal scratch']
  %s0 = inlined_call_operand.vmem [shape: f32[8,48], index: 0, kind: input, shape index: {}]
  %s1 = inlined_call_operand.hbm [shape: f32[48,2048], index: 1, kind: input, shape index: {}]
  %s2 = inlined_call_operand.hbm [shape: bf16[2048,128], index: 2, kind: input, shape index: {}]
  %s3 = inlined_call_operand.hbm [shape: f32[4,2048], index: 3, kind: input, shape index: {}]
  %s4 = inlined_call_operand.vmem [shape: f32[1,8], index: 4, kind: output, shape index: {}]
  %s5 = sld [smem:[#allocation0]]
  $region38: #{critic_forward.1} parent=0
    _
  %s7 = ssub.s32 1, %s5
  %s8 = scalar_select 0, %s7, %s5
  $region1: #{critic_forward.1} parent=0
    #allocation2 [shape = 'u8[393216]{0}', space=vmem, size = 0x60000, scoped, tag = 'input window, operand 1, single buffered']
    #allocation3 [shape = 's32[1]{0}', space=sflag, size = 0x4, scoped, tag = 'scoped memory for critic_forward.1']
    #allocation4 [shape = 'u8[524288]{0}', space=vmem, size = 0x80000, scoped, tag = 'input window, operand 2, single buffered']
    #allocation5 [shape = 's32[1]{0}', space=sflag, size = 0x4, scoped, tag = 'scoped memory for critic_forward.1']
    #allocation6 [shape = 'u8[32768]{0}', space=vmem, size = 0x8000, scoped, tag = 'input window, operand 3, single buffered']
    %9 = vsyncpa [#allocation3], 0
    %10 = vsyncpa [#allocation5], 0
    // Predicated region
    $region2: #{critic_forward.1} parent=1 // pred_check
      _
    $region3: #{critic_forward.1} parent=1 // pred_check_branch
      %12 = sbr.rel (0) target = $region5
    $region4: #{critic_forward.1} parent=1 // pred_region
      _
    $region5: #{critic_forward.1} parent=1 // pred_fallthru
      _
    // Predicated region
    $region6: #{critic_forward.1} parent=1 // pred_check
      _
    $region7: #{critic_forward.1} parent=1 // pred_check_branch
      %14 = sbr.rel (0) target = $region9
    $region8: #{critic_forward.1} parent=1 // pred_region
      %16 = vsyncadd [#allocation3], 0
      %s17 = sshll.u32 %s1, 4
      %s18 = int_to_ptr.hbm [resolvable:$true] %s17
      %s19 = sshll.u32 [#allocation2], 4
      %s20 = int_to_ptr.vmem [resolvable:$true] %s19
      %25 = dma.hbm_to_vmem [thread:$0]  %s18, 12288, %s20, [#allocation3], 2048, 2048, 128
    $region9: #{critic_forward.1} parent=1 // pred_fallthru
      _
    // Predicated region
    $region10: #{critic_forward.1} parent=1 // pred_check
      _
    $region11: #{critic_forward.1} parent=1 // pred_check_branch
      %27 = sbr.rel (0) target = $region13
    $region12: #{critic_forward.1} parent=1 // pred_region
      %29 = vsyncadd [#allocation5], 0
      %s30 = sshll.u32 %s2, 4
      %s31 = int_to_ptr.hbm [resolvable:$true] %s30
      %s32 = sshll.u32 [#allocation4], 4
      %s33 = int_to_ptr.vmem [resolvable:$true] %s32
      %38 = dma.hbm_to_vmem [thread:$0]  %s31, 16384, %s33, [#allocation5], 64, 64, 4
    $region13: #{critic_forward.1} parent=1 // pred_fallthru
      _
    // Predicated region
    $region14: #{critic_forward.1} parent=1 // pred_check
      _
    $region15: #{critic_forward.1} parent=1 // pred_check_branch
      %40 = sbr.rel (0) target = $region17
    $region16: #{critic_forward.1} parent=1 // pred_region
      %42 = vsyncadd [#allocation5], 0
      %s44 = sshll.u32 %s3, 4
      %s45 = int_to_ptr.hbm [resolvable:$true] %s44
      %s46 = sshll.u32 [#allocation6], 4
      %s47 = int_to_ptr.vmem [resolvable:$true] %s46
      %49 = dma.hbm_to_vmem [thread:$0]  %s45, 1024, %s47, [#allocation5]
    $region17: #{critic_forward.1} parent=1 // pred_fallthru
      _
    // Predicated region
    $region18: #{critic_forward.1} parent=1 // pred_check
      _
    $region19: #{critic_forward.1} parent=1 // pred_check_branch
      %51 = sbr.rel (0) target = $region21
    $region20: #{critic_forward.1} parent=1 // pred_region
      %53 = dma.done [#allocation3], 12288
    $region21: #{critic_forward.1} parent=1 // pred_fallthru
      _
    // Predicated region
    $region22: #{critic_forward.1} parent=1 // pred_check
      _
    $region23: #{critic_forward.1} parent=1 // pred_check_branch
      %55 = sbr.rel (0) target = $region25
    $region24: #{critic_forward.1} parent=1 // pred_region
      %57 = dma.done [#allocation5], 16384
    $region25: #{critic_forward.1} parent=1 // pred_fallthru
      _
    // Predicated region
    $region26: #{critic_forward.1} parent=1 // pred_check
      _
    $region27: #{critic_forward.1} parent=1 // pred_check_branch
      %59 = sbr.rel (0) target = $region29
    $region28: #{critic_forward.1} parent=1 // pred_region
      %61 = dma.done [#allocation5], 1024
    $region29: #{critic_forward.1} parent=1 // pred_fallthru
      _
    %v62 = vld [vmem:[%s0] sm:$0xff]
    %v63 = vld [vmem:[#allocation6] sm:$0xff]
    %v64 = vld [vmem:[#allocation6 + $0x8] sm:$0xff]
    %v65 = vld [vmem:[#allocation6 + $0x10] sm:$0xff]
    %v66 = vld [vmem:[#allocation6 + $0x18] sm:$0xff]
    %v67 = vld [vmem:[#allocation6 + $0x20] sm:$0xff]
    %v68 = vld [vmem:[#allocation6 + $0x28] sm:$0xff]
    %v69 = vld [vmem:[#allocation6 + $0x30] sm:$0xff]
    %v70 = vld [vmem:[#allocation6 + $0x38] sm:$0xff]
    %v71 = vld [vmem:[#allocation2] sm:$0xff]
    %v72 = vld [vmem:[#allocation2 + $0x8] sm:$0xff]
    %v73 = vld [vmem:[#allocation2 + $0x10] sm:$0xff]
    %v74 = vld [vmem:[#allocation2 + $0x18] sm:$0xff]
    %v75 = vld [vmem:[#allocation2 + $0x20] sm:$0xff]
    %v76 = vld [vmem:[#allocation2 + $0x28] sm:$0xff]
    %v77 = vld [vmem:[#allocation2 + $0x30] sm:$0xff]
    %v78 = vld [vmem:[#allocation2 + $0x38] sm:$0xff]
    %v79 = vld [vmem:[#allocation2 + $0x40] sm:$0xff]
    %v80 = vld [vmem:[#allocation2 + $0x48] sm:$0xff]
    %v81 = vld [vmem:[#allocation2 + $0x50] sm:$0xff]
    %v82 = vld [vmem:[#allocation2 + $0x58] sm:$0xff]
    %v83 = vld [vmem:[#allocation2 + $0x60] sm:$0xff]
    %v84 = vld [vmem:[#allocation2 + $0x68] sm:$0xff]
    %v85 = vld [vmem:[#allocation2 + $0x70] sm:$0xff]
    %v86 = vld [vmem:[#allocation2 + $0x78] sm:$0xff]
    %v87 = vld [vmem:[#allocation2 + $0x80] sm:$0xff]
    %v88 = vld [vmem:[#allocation2 + $0x88] sm:$0xff]
    %v89 = vld [vmem:[#allocation2 + $0x90] sm:$0xff]
    %v90 = vld [vmem:[#allocation2 + $0x98] sm:$0xff]
    %v91 = vld [vmem:[#allocation2 + $0xa0] sm:$0xff]
    %v92 = vld [vmem:[#allocation2 + $0xa8] sm:$0xff]
    %v93 = vld [vmem:[#allocation2 + $0xb0] sm:$0xff]
    %v94 = vld [vmem:[#allocation2 + $0xb8] sm:$0xff]
    %v95 = vld [vmem:[#allocation2 + $0xc0] sm:$0xff]
    %v96 = vld [vmem:[#allocation2 + $0xc8] sm:$0xff]
    %v97 = vld [vmem:[#allocation2 + $0xd0] sm:$0xff]
    %v98 = vld [vmem:[#allocation2 + $0xd8] sm:$0xff]
    %v99 = vld [vmem:[#allocation2 + $0xe0] sm:$0xff]
    %v100 = vld [vmem:[#allocation2 + $0xe8] sm:$0xff]
    %v101 = vld [vmem:[#allocation2 + $0xf0] sm:$0xff]
    %v102 = vld [vmem:[#allocation2 + $0xf8] sm:$0xff]
    %v103 = vld [vmem:[#allocation2 + $0x100] sm:$0xff]
    %v104 = vld [vmem:[#allocation2 + $0x108] sm:$0xff]
    %v105 = vld [vmem:[#allocation2 + $0x110] sm:$0xff]
    %v106 = vld [vmem:[#allocation2 + $0x118] sm:$0xff]
    %v107 = vld [vmem:[#allocation2 + $0x120] sm:$0xff]
    %v108 = vld [vmem:[#allocation2 + $0x128] sm:$0xff]
    %v109 = vld [vmem:[#allocation2 + $0x130] sm:$0xff]
    %v110 = vld [vmem:[#allocation2 + $0x138] sm:$0xff]
    %v111 = vld [vmem:[#allocation2 + $0x140] sm:$0xff]
    %v112 = vld [vmem:[#allocation2 + $0x148] sm:$0xff]
    %v113 = vld [vmem:[#allocation2 + $0x150] sm:$0xff]
    %v114 = vld [vmem:[#allocation2 + $0x158] sm:$0xff]
    %v115 = vld [vmem:[#allocation2 + $0x160] sm:$0xff]
    %v116 = vld [vmem:[#allocation2 + $0x168] sm:$0xff]
    %v117 = vld [vmem:[#allocation2 + $0x170] sm:$0xff]
    %v118 = vld [vmem:[#allocation2 + $0x178] sm:$0xff]
    %v119 = vld [vmem:[#allocation2 + $0x180] sm:$0xff]
    %v120 = vld [vmem:[#allocation2 + $0x188] sm:$0xff]
    %v121 = vld [vmem:[#allocation2 + $0x190] sm:$0xff]
    %v122 = vld [vmem:[#allocation2 + $0x198] sm:$0xff]
    %v123 = vld [vmem:[#allocation2 + $0x1a0] sm:$0xff]
    %v124 = vld [vmem:[#allocation2 + $0x1a8] sm:$0xff]
    %v125 = vld [vmem:[#allocation2 + $0x1b0] sm:$0xff]
    %v126 = vld [vmem:[#allocation2 + $0x1b8] sm:$0xff]
    %v127 = vld [vmem:[#allocation2 + $0x1c0] sm:$0xff]
    %v128 = vld [vmem:[#allocation2 + $0x1c8] sm:$0xff]
    %v129 = vld [vmem:[#allocation2 + $0x1d0] sm:$0xff]
    %v130 = vld [vmem:[#allocation2 + $0x1d8] sm:$0xff]
    %v131 = vld [vmem:[#allocation2 + $0x1e0] sm:$0xff]
    %v132 = vld [vmem:[#allocation2 + $0x1e8] sm:$0xff]
    %v133 = vld [vmem:[#allocation2 + $0x1f0] sm:$0xff]
    %v134 = vld [vmem:[#allocation2 + $0x1f8] sm:$0xff]
    %v135 = vld [vmem:[#allocation2 + $0x200] sm:$0xff]
    %v136 = vld [vmem:[#allocation2 + $0x208] sm:$0xff]
    %v137 = vld [vmem:[#allocation2 + $0x210] sm:$0xff]
    %v138 = vld [vmem:[#allocation2 + $0x218] sm:$0xff]
    %v139 = vld [vmem:[#allocation2 + $0x220] sm:$0xff]
    %v140 = vld [vmem:[#allocation2 + $0x228] sm:$0xff]
    %v141 = vld [vmem:[#allocation2 + $0x230] sm:$0xff]
    %v142 = vld [vmem:[#allocation2 + $0x238] sm:$0xff]
    %v143 = vld [vmem:[#allocation2 + $0x240] sm:$0xff]
    %v144 = vld [vmem:[#allocation2 + $0x248] sm:$0xff]
    %v145 = vld [vmem:[#allocation2 + $0x250] sm:$0xff]
    %v146 = vld [vmem:[#allocation2 + $0x258] sm:$0xff]
    %v147 = vld [vmem:[#allocation2 + $0x260] sm:$0xff]
    %v148 = vld [vmem:[#allocation2 + $0x268] sm:$0xff]
    %v149 = vld [vmem:[#allocation2 + $0x270] sm:$0xff]
    %v150 = vld [vmem:[#allocation2 + $0x278] sm:$0xff]
    %v151 = vld [vmem:[#allocation2 + $0x280] sm:$0xff]
    %v152 = vld [vmem:[#allocation2 + $0x288] sm:$0xff]
    %v153 = vld [vmem:[#allocation2 + $0x290] sm:$0xff]
    %v154 = vld [vmem:[#allocation2 + $0x298] sm:$0xff]
    %v155 = vld [vmem:[#allocation2 + $0x2a0] sm:$0xff]
    %v156 = vld [vmem:[#allocation2 + $0x2a8] sm:$0xff]
    %v157 = vld [vmem:[#allocation2 + $0x2b0] sm:$0xff]
    %v158 = vld [vmem:[#allocation2 + $0x2b8] sm:$0xff]
    %v159 = vld [vmem:[#allocation2 + $0x2c0] sm:$0xff]
    %v160 = vld [vmem:[#allocation2 + $0x2c8] sm:$0xff]
    %v161 = vld [vmem:[#allocation2 + $0x2d0] sm:$0xff]
    %v162 = vld [vmem:[#allocation2 + $0x2d8] sm:$0xff]
    %v163 = vld [vmem:[#allocation2 + $0x2e0] sm:$0xff]
    %v164 = vld [vmem:[#allocation2 + $0x2e8] sm:$0xff]
    %v165 = vld [vmem:[#allocation2 + $0x2f0] sm:$0xff]
    %v166 = vld [vmem:[#allocation2 + $0x2f8] sm:$0xff]
    %v175 = vperm.slane %v63, 0
    %v176 = vperm.slane %v63, 4
    %v177 = vperm.slane %v64, 0
    %v178 = vperm.slane %v64, 4
    %v179 = vperm.slane %v65, 0
    %v180 = vperm.slane %v65, 4
    %v181 = vperm.slane %v66, 0
    %v182 = vperm.slane %v66, 4
    %v183 = vperm.slane %v67, 0
    %v184 = vperm.slane %v67, 4
    %v185 = vperm.slane %v68, 0
    %v186 = vperm.slane %v68, 4
    %v187 = vperm.slane %v69, 0
    %v188 = vperm.slane %v69, 4
    %v189 = vperm.slane %v70, 0
    %v190 = vperm.slane %v70, 4
    %v207 = vperm.slane %v175, 0
    %v208 = vperm.slane %v176, 0
    %v209 = vperm.slane %v177, 0
    %v210 = vperm.slane %v178, 0
    %v211 = vperm.slane %v179, 0
    %v212 = vperm.slane %v180, 0
    %v213 = vperm.slane %v181, 0
    %v214 = vperm.slane %v182, 0
    %v215 = vperm.slane %v183, 0
    %v216 = vperm.slane %v184, 0
    %v217 = vperm.slane %v185, 0
    %v218 = vperm.slane %v186, 0
    %v219 = vperm.slane %v187, 0
    %v220 = vperm.slane %v188, 0
    %v221 = vperm.slane %v189, 0
    %v222 = vperm.slane %v190, 0
    %vm223 = vcmask 392192
    %v225 = vsel %vm223, %v62, 0
    %227 = vmatpush.msra.mxu0 0.0
    %228 = vmatpush.msra.mxu0 0.0
    %229 = vmatpush.msra.mxu0 0.0
    %230 = vmatpush.msra.mxu0 0.0
    %231 = vmatpush.msra.mxu0 0.0
    %232 = vmatpush.msra.mxu0 0.0
    %233 = vmatpush.msra.mxu0 0.0
    %234 = vmatpush.msra.mxu0 0.0
    %235 = vmatpush.msra.mxu0 0.0
    %236 = vmatpush.msra.mxu0 0.0
    %237 = vmatpush.msra.mxu0 %v151
    %238 = vmatpush.msra.mxu0 %v135
    %239 = vmatpush.msra.mxu0 %v119
    %240 = vmatpush.msra.mxu0 %v103
    %241 = vmatpush.msra.mxu0 %v87
    %242 = vmatpush.msra.mxu0 %v71
    %243 = vmatmul.f32.gmra.mxu0 %v225
    %v244 = vpop.f32.mrf.mxu0
    %v245 = vadd.f32 %v207, %v244
    %246 = vdwg.mxu0
    %247 = vmatpush.msra.mxu0 0.0
    %248 = vmatpush.msra.mxu0 0.0
    %249 = vmatpush.msra.mxu0 0.0
    %250 = vmatpush.msra.mxu0 0.0
    %251 = vmatpush.msra.mxu0 0.0
    %252 = vmatpush.msra.mxu0 0.0
    %253 = vmatpush.msra.mxu0 0.0
    %254 = vmatpush.msra.mxu0 0.0
    %255 = vmatpush.msra.mxu0 0.0
    %256 = vmatpush.msra.mxu0 0.0
    %257 = vmatpush.msra.mxu0 %v152
    %258 = vmatpush.msra.mxu0 %v136
    %259 = vmatpush.msra.mxu0 %v120
    %260 = vmatpush.msra.mxu0 %v104
    %261 = vmatpush.msra.mxu0 %v88
    %262 = vmatpush.msra.mxu0 %v72
    %263 = vmatmul.f32.gmra.mxu0 %v225
    %v264 = vpop.f32.mrf.mxu0
    %v265 = vadd.f32 %v208, %v264
    %266 = vdwg.mxu0
    %267 = vmatpush.msra.mxu0 0.0
    %268 = vmatpush.msra.mxu0 0.0
    %269 = vmatpush.msra.mxu0 0.0
    %270 = vmatpush.msra.mxu0 0.0
    %271 = vmatpush.msra.mxu0 0.0
    %272 = vmatpush.msra.mxu0 0.0
    %273 = vmatpush.msra.mxu0 0.0
    %274 = vmatpush.msra.mxu0 0.0
    %275 = vmatpush.msra.mxu0 0.0
    %276 = vmatpush.msra.mxu0 0.0
    %277 = vmatpush.msra.mxu0 %v153
    %278 = vmatpush.msra.mxu0 %v137
    %279 = vmatpush.msra.mxu0 %v121
    %280 = vmatpush.msra.mxu0 %v105
    %281 = vmatpush.msra.mxu0 %v89
    %282 = vmatpush.msra.mxu0 %v73
    %283 = vmatmul.f32.gmra.mxu0 %v225
    %v284 = vpop.f32.mrf.mxu0
    %v285 = vadd.f32 %v209, %v284
    %286 = vdwg.mxu0
    %287 = vmatpush.msra.mxu0 0.0
    %288 = vmatpush.msra.mxu0 0.0
    %289 = vmatpush.msra.mxu0 0.0
    %290 = vmatpush.msra.mxu0 0.0
    %291 = vmatpush.msra.mxu0 0.0
    %292 = vmatpush.msra.mxu0 0.0
    %293 = vmatpush.msra.mxu0 0.0
    %294 = vmatpush.msra.mxu0 0.0
    %295 = vmatpush.msra.mxu0 0.0
    %296 = vmatpush.msra.mxu0 0.0
    %297 = vmatpush.msra.mxu0 %v154
    %298 = vmatpush.msra.mxu0 %v138
    %299 = vmatpush.msra.mxu0 %v122
    %300 = vmatpush.msra.mxu0 %v106
    %301 = vmatpush.msra.mxu0 %v90
    %302 = vmatpush.msra.mxu0 %v74
    %303 = vmatmul.f32.gmra.mxu0 %v225
    %v304 = vpop.f32.mrf.mxu0
    %v305 = vadd.f32 %v210, %v304
    %306 = vdwg.mxu0
    %307 = vmatpush.msra.mxu0 0.0
    %308 = vmatpush.msra.mxu0 0.0
    %309 = vmatpush.msra.mxu0 0.0
    %310 = vmatpush.msra.mxu0 0.0
    %311 = vmatpush.msra.mxu0 0.0
    %312 = vmatpush.msra.mxu0 0.0
    %313 = vmatpush.msra.mxu0 0.0
    %314 = vmatpush.msra.mxu0 0.0
    %315 = vmatpush.msra.mxu0 0.0
    %316 = vmatpush.msra.mxu0 0.0
    %317 = vmatpush.msra.mxu0 %v155
    %318 = vmatpush.msra.mxu0 %v139
    %319 = vmatpush.msra.mxu0 %v123
    %320 = vmatpush.msra.mxu0 %v107
    %321 = vmatpush.msra.mxu0 %v91
    %322 = vmatpush.msra.mxu0 %v75
    %323 = vmatmul.f32.gmra.mxu0 %v225
    %v324 = vpop.f32.mrf.mxu0
    %v325 = vadd.f32 %v211, %v324
    %326 = vdwg.mxu0
    %327 = vmatpush.msra.mxu0 0.0
    %328 = vmatpush.msra.mxu0 0.0
    %329 = vmatpush.msra.mxu0 0.0
    %330 = vmatpush.msra.mxu0 0.0
    %331 = vmatpush.msra.mxu0 0.0
    %332 = vmatpush.msra.mxu0 0.0
    %333 = vmatpush.msra.mxu0 0.0
    %334 = vmatpush.msra.mxu0 0.0
    %335 = vmatpush.msra.mxu0 0.0
    %336 = vmatpush.msra.mxu0 0.0
    %337 = vmatpush.msra.mxu0 %v156
    %338 = vmatpush.msra.mxu0 %v140
    %339 = vmatpush.msra.mxu0 %v124
    %340 = vmatpush.msra.mxu0 %v108
    %341 = vmatpush.msra.mxu0 %v92
    %342 = vmatpush.msra.mxu0 %v76
    %343 = vmatmul.f32.gmra.mxu0 %v225
    %v344 = vpop.f32.mrf.mxu0
    %v345 = vadd.f32 %v212, %v344
    %346 = vdwg.mxu0
    %347 = vmatpush.msra.mxu0 0.0
    %348 = vmatpush.msra.mxu0 0.0
    %349 = vmatpush.msra.mxu0 0.0
    %350 = vmatpush.msra.mxu0 0.0
    %351 = vmatpush.msra.mxu0 0.0
    %352 = vmatpush.msra.mxu0 0.0
    %353 = vmatpush.msra.mxu0 0.0
    %354 = vmatpush.msra.mxu0 0.0
    %355 = vmatpush.msra.mxu0 0.0
    %356 = vmatpush.msra.mxu0 0.0
    %357 = vmatpush.msra.mxu0 %v157
    %358 = vmatpush.msra.mxu0 %v141
    %359 = vmatpush.msra.mxu0 %v125
    %360 = vmatpush.msra.mxu0 %v109
    %361 = vmatpush.msra.mxu0 %v93
    %362 = vmatpush.msra.mxu0 %v77
    %363 = vmatmul.f32.gmra.mxu0 %v225
    %v364 = vpop.f32.mrf.mxu0
    %v365 = vadd.f32 %v213, %v364
    %366 = vdwg.mxu0
    %367 = vmatpush.msra.mxu0 0.0
    %368 = vmatpush.msra.mxu0 0.0
    %369 = vmatpush.msra.mxu0 0.0
    %370 = vmatpush.msra.mxu0 0.0
    %371 = vmatpush.msra.mxu0 0.0
    %372 = vmatpush.msra.mxu0 0.0
    %373 = vmatpush.msra.mxu0 0.0
    %374 = vmatpush.msra.mxu0 0.0
    %375 = vmatpush.msra.mxu0 0.0
    %376 = vmatpush.msra.mxu0 0.0
    %377 = vmatpush.msra.mxu0 %v158
    %378 = vmatpush.msra.mxu0 %v142
    %379 = vmatpush.msra.mxu0 %v126
    %380 = vmatpush.msra.mxu0 %v110
    %381 = vmatpush.msra.mxu0 %v94
    %382 = vmatpush.msra.mxu0 %v78
    %383 = vmatmul.f32.gmra.mxu0 %v225
    %v384 = vpop.f32.mrf.mxu0
    %v385 = vadd.f32 %v214, %v384
    %386 = vdwg.mxu0
    %387 = vmatpush.msra.mxu0 0.0
    %388 = vmatpush.msra.mxu0 0.0
    %389 = vmatpush.msra.mxu0 0.0
    %390 = vmatpush.msra.mxu0 0.0
    %391 = vmatpush.msra.mxu0 0.0
    %392 = vmatpush.msra.mxu0 0.0
    %393 = vmatpush.msra.mxu0 0.0
    %394 = vmatpush.msra.mxu0 0.0
    %395 = vmatpush.msra.mxu0 0.0
    %396 = vmatpush.msra.mxu0 0.0
    %397 = vmatpush.msra.mxu0 %v159
    %398 = vmatpush.msra.mxu0 %v143
    %399 = vmatpush.msra.mxu0 %v127
    %400 = vmatpush.msra.mxu0 %v111
    %401 = vmatpush.msra.mxu0 %v95
    %402 = vmatpush.msra.mxu0 %v79
    %403 = vmatmul.f32.gmra.mxu0 %v225
    %v404 = vpop.f32.mrf.mxu0
    %v405 = vadd.f32 %v215, %v404
    %406 = vdwg.mxu0
    %407 = vmatpush.msra.mxu0 0.0
    %408 = vmatpush.msra.mxu0 0.0
    %409 = vmatpush.msra.mxu0 0.0
    %410 = vmatpush.msra.mxu0 0.0
    %411 = vmatpush.msra.mxu0 0.0
    %412 = vmatpush.msra.mxu0 0.0
    %413 = vmatpush.msra.mxu0 0.0
    %414 = vmatpush.msra.mxu0 0.0
    %415 = vmatpush.msra.mxu0 0.0
    %416 = vmatpush.msra.mxu0 0.0
    %417 = vmatpush.msra.mxu0 %v160
    %418 = vmatpush.msra.mxu0 %v144
    %419 = vmatpush.msra.mxu0 %v128
    %420 = vmatpush.msra.mxu0 %v112
    %421 = vmatpush.msra.mxu0 %v96
    %422 = vmatpush.msra.mxu0 %v80
    %423 = vmatmul.f32.gmra.mxu0 %v225
    %v424 = vpop.f32.mrf.mxu0
    %v425 = vadd.f32 %v216, %v424
    %426 = vdwg.mxu0
    %427 = vmatpush.msra.mxu0 0.0
    %428 = vmatpush.msra.mxu0 0.0
    %429 = vmatpush.msra.mxu0 0.0
    %430 = vmatpush.msra.mxu0 0.0
    %431 = vmatpush.msra.mxu0 0.0
    %432 = vmatpush.msra.mxu0 0.0
    %433 = vmatpush.msra.mxu0 0.0
    %434 = vmatpush.msra.mxu0 0.0
    %435 = vmatpush.msra.mxu0 0.0
    %436 = vmatpush.msra.mxu0 0.0
    %437 = vmatpush.msra.mxu0 %v161
    %438 = vmatpush.msra.mxu0 %v145
    %439 = vmatpush.msra.mxu0 %v129
    %440 = vmatpush.msra.mxu0 %v113
    %441 = vmatpush.msra.mxu0 %v97
    %442 = vmatpush.msra.mxu0 %v81
    %443 = vmatmul.f32.gmra.mxu0 %v225
    %v444 = vpop.f32.mrf.mxu0
    %v445 = vadd.f32 %v217, %v444
    %446 = vdwg.mxu0
    %447 = vmatpush.msra.mxu0 0.0
    %448 = vmatpush.msra.mxu0 0.0
    %449 = vmatpush.msra.mxu0 0.0
    %450 = vmatpush.msra.mxu0 0.0
    %451 = vmatpush.msra.mxu0 0.0
    %452 = vmatpush.msra.mxu0 0.0
    %453 = vmatpush.msra.mxu0 0.0
    %454 = vmatpush.msra.mxu0 0.0
    %455 = vmatpush.msra.mxu0 0.0
    %456 = vmatpush.msra.mxu0 0.0
    %457 = vmatpush.msra.mxu0 %v162
    %458 = vmatpush.msra.mxu0 %v146
    %459 = vmatpush.msra.mxu0 %v130
    %460 = vmatpush.msra.mxu0 %v114
    %461 = vmatpush.msra.mxu0 %v98
    %462 = vmatpush.msra.mxu0 %v82
    %463 = vmatmul.f32.gmra.mxu0 %v225
    %v464 = vpop.f32.mrf.mxu0
    %v465 = vadd.f32 %v218, %v464
    %466 = vdwg.mxu0
    %467 = vmatpush.msra.mxu0 0.0
    %468 = vmatpush.msra.mxu0 0.0
    %469 = vmatpush.msra.mxu0 0.0
    %470 = vmatpush.msra.mxu0 0.0
    %471 = vmatpush.msra.mxu0 0.0
    %472 = vmatpush.msra.mxu0 0.0
    %473 = vmatpush.msra.mxu0 0.0
    %474 = vmatpush.msra.mxu0 0.0
    %475 = vmatpush.msra.mxu0 0.0
    %476 = vmatpush.msra.mxu0 0.0
    %477 = vmatpush.msra.mxu0 %v163
    %478 = vmatpush.msra.mxu0 %v147
    %479 = vmatpush.msra.mxu0 %v131
    %480 = vmatpush.msra.mxu0 %v115
    %481 = vmatpush.msra.mxu0 %v99
    %482 = vmatpush.msra.mxu0 %v83
    %483 = vmatmul.f32.gmra.mxu0 %v225
    %v484 = vpop.f32.mrf.mxu0
    %v485 = vadd.f32 %v219, %v484
    %486 = vdwg.mxu0
    %487 = vmatpush.msra.mxu0 0.0
    %488 = vmatpush.msra.mxu0 0.0
    %489 = vmatpush.msra.mxu0 0.0
    %490 = vmatpush.msra.mxu0 0.0
    %491 = vmatpush.msra.mxu0 0.0
    %492 = vmatpush.msra.mxu0 0.0
    %493 = vmatpush.msra.mxu0 0.0
    %494 = vmatpush.msra.mxu0 0.0
    %495 = vmatpush.msra.mxu0 0.0
    %496 = vmatpush.msra.mxu0 0.0
    %497 = vmatpush.msra.mxu0 %v164
    %498 = vmatpush.msra.mxu0 %v148
    %499 = vmatpush.msra.mxu0 %v132
    %500 = vmatpush.msra.mxu0 %v116
    %501 = vmatpush.msra.mxu0 %v100
    %502 = vmatpush.msra.mxu0 %v84
    %503 = vmatmul.f32.gmra.mxu0 %v225
    %v504 = vpop.f32.mrf.mxu0
    %v505 = vadd.f32 %v220, %v504
    %506 = vdwg.mxu0
    %507 = vmatpush.msra.mxu0 0.0
    %508 = vmatpush.msra.mxu0 0.0
    %509 = vmatpush.msra.mxu0 0.0
    %510 = vmatpush.msra.mxu0 0.0
    %511 = vmatpush.msra.mxu0 0.0
    %512 = vmatpush.msra.mxu0 0.0
    %513 = vmatpush.msra.mxu0 0.0
    %514 = vmatpush.msra.mxu0 0.0
    %515 = vmatpush.msra.mxu0 0.0
    %516 = vmatpush.msra.mxu0 0.0
    %517 = vmatpush.msra.mxu0 %v165
    %518 = vmatpush.msra.mxu0 %v149
    %519 = vmatpush.msra.mxu0 %v133
    %520 = vmatpush.msra.mxu0 %v117
    %521 = vmatpush.msra.mxu0 %v101
    %522 = vmatpush.msra.mxu0 %v85
    %523 = vmatmul.f32.gmra.mxu0 %v225
    %v524 = vpop.f32.mrf.mxu0
    %v525 = vadd.f32 %v221, %v524
    %526 = vdwg.mxu0
    %527 = vmatpush.msra.mxu0 0.0
    %528 = vmatpush.msra.mxu0 0.0
    %529 = vmatpush.msra.mxu0 0.0
    %530 = vmatpush.msra.mxu0 0.0
    %531 = vmatpush.msra.mxu0 0.0
    %532 = vmatpush.msra.mxu0 0.0
    %533 = vmatpush.msra.mxu0 0.0
    %534 = vmatpush.msra.mxu0 0.0
    %535 = vmatpush.msra.mxu0 0.0
    %536 = vmatpush.msra.mxu0 0.0
    %537 = vmatpush.msra.mxu0 %v166
    %538 = vmatpush.msra.mxu0 %v150
    %539 = vmatpush.msra.mxu0 %v134
    %540 = vmatpush.msra.mxu0 %v118
    %541 = vmatpush.msra.mxu0 %v102
    %542 = vmatpush.msra.mxu0 %v86
    %543 = vmatmul.f32.gmra.mxu0 %v225
    %v544 = vpop.f32.mrf.mxu0
    %v545 = vadd.f32 %v222, %v544
    %546 = vdwg.mxu0
    %v547 = vmax.f32 %v245, 0.0
    %v548 = vmax.f32 %v265, 0.0
    %v549 = vmax.f32 %v285, 0.0
    %v550 = vmax.f32 %v305, 0.0
    %v551 = vmax.f32 %v325, 0.0
    %v552 = vmax.f32 %v345, 0.0
    %v553 = vmax.f32 %v365, 0.0
    %v554 = vmax.f32 %v385, 0.0
    %v555 = vmax.f32 %v405, 0.0
    %v556 = vmax.f32 %v425, 0.0
    %v557 = vmax.f32 %v445, 0.0
    %v558 = vmax.f32 %v465, 0.0
    %v559 = vmax.f32 %v485, 0.0
    %v560 = vmax.f32 %v505, 0.0
    %v561 = vmax.f32 %v525, 0.0
    %v562 = vmax.f32 %v545, 0.0
    %v563 = vpack.c.bf16 %v547, %v547
    %v564 = vpack.c.bf16 %v548, %v548
    %v565 = vpack.c.bf16 %v549, %v549
    %v566 = vpack.c.bf16 %v550, %v550
    %v567 = vpack.c.bf16 %v551, %v551
    %v568 = vpack.c.bf16 %v552, %v552
    %v569 = vpack.c.bf16 %v553, %v553
    %v570 = vpack.c.bf16 %v554, %v554
    %v571 = vpack.c.bf16 %v555, %v555
    %v572 = vpack.c.bf16 %v556, %v556
    %v573 = vpack.c.bf16 %v557, %v557
    %v574 = vpack.c.bf16 %v558, %v558
    %v575 = vpack.c.bf16 %v559, %v559
    %v576 = vpack.c.bf16 %v560, %v560
    %v577 = vpack.c.bf16 %v561, %v561
    %v578 = vpack.c.bf16 %v562, %v562
    %v579 = vld [vmem:[#allocation4] sm:$0xf]
    %v580 = vld [vmem:[#allocation4 + $0x4] sm:$0xf]
    %v581 = vld [vmem:[#allocation4 + $0x8] sm:$0xf]
    %v582 = vld [vmem:[#allocation4 + $0xc] sm:$0xf]
    %v583 = vld [vmem:[#allocation4 + $0x10] sm:$0xf]
    %v584 = vld [vmem:[#allocation4 + $0x14] sm:$0xf]
    %v585 = vld [vmem:[#allocation4 + $0x18] sm:$0xf]
    %v586 = vld [vmem:[#allocation4 + $0x1c] sm:$0xf]
    %v587 = vld [vmem:[#allocation4 + $0x20] sm:$0xf]
    %v588 = vld [vmem:[#allocation4 + $0x24] sm:$0xf]
    %v589 = vld [vmem:[#allocation4 + $0x28] sm:$0xf]
    %v590 = vld [vmem:[#allocation4 + $0x2c] sm:$0xf]
    %v591 = vld [vmem:[#allocation4 + $0x30] sm:$0xf]
    %v592 = vld [vmem:[#allocation4 + $0x34] sm:$0xf]
    %v593 = vld [vmem:[#allocation4 + $0x38] sm:$0xf]
    %v594 = vld [vmem:[#allocation4 + $0x3c] sm:$0xf]
    %v595 = vld [vmem:[#allocation4 + $0x40] sm:$0xf]
    %v596 = vld [vmem:[#allocation4 + $0x44] sm:$0xf]
    %v597 = vld [vmem:[#allocation4 + $0x48] sm:$0xf]
    %v598 = vld [vmem:[#allocation4 + $0x4c] sm:$0xf]
    %v599 = vld [vmem:[#allocation4 + $0x50] sm:$0xf]
    %v600 = vld [vmem:[#allocation4 + $0x54] sm:$0xf]
    %v601 = vld [vmem:[#allocation4 + $0x58] sm:$0xf]
    %v602 = vld [vmem:[#allocation4 + $0x5c] sm:$0xf]
    %v603 = vld [vmem:[#allocation4 + $0x60] sm:$0xf]
    %v604 = vld [vmem:[#allocation4 + $0x64] sm:$0xf]
    %v605 = vld [vmem:[#allocation4 + $0x68] sm:$0xf]
    %v606 = vld [vmem:[#allocation4 + $0x6c] sm:$0xf]
    %v607 = vld [vmem:[#allocation4 + $0x70] sm:$0xf]
    %v608 = vld [vmem:[#allocation4 + $0x74] sm:$0xf]
    %v609 = vld [vmem:[#allocation4 + $0x78] sm:$0xf]
    %v610 = vld [vmem:[#allocation4 + $0x7c] sm:$0xf]
    %v611 = vld [vmem:[#allocation4 + $0x80] sm:$0xf]
    %v612 = vld [vmem:[#allocation4 + $0x84] sm:$0xf]
    %v613 = vld [vmem:[#allocation4 + $0x88] sm:$0xf]
    %v614 = vld [vmem:[#allocation4 + $0x8c] sm:$0xf]
    %v615 = vld [vmem:[#allocation4 + $0x90] sm:$0xf]
    %v616 = vld [vmem:[#allocation4 + $0x94] sm:$0xf]
    %v617 = vld [vmem:[#allocation4 + $0x98] sm:$0xf]
    %v618 = vld [vmem:[#allocation4 + $0x9c] sm:$0xf]
    %v619 = vld [vmem:[#allocation4 + $0xa0] sm:$0xf]
    %v620 = vld [vmem:[#allocation4 + $0xa4] sm:$0xf]
    %v621 = vld [vmem:[#allocation4 + $0xa8] sm:$0xf]
    %v622 = vld [vmem:[#allocation4 + $0xac] sm:$0xf]
    %v623 = vld [vmem:[#allocation4 + $0xb0] sm:$0xf]
    %v624 = vld [vmem:[#allocation4 + $0xb4] sm:$0xf]
    %v625 = vld [vmem:[#allocation4 + $0xb8] sm:$0xf]
    %v626 = vld [vmem:[#allocation4 + $0xbc] sm:$0xf]
    %v627 = vld [vmem:[#allocation4 + $0xc0] sm:$0xf]
    %v628 = vld [vmem:[#allocation4 + $0xc4] sm:$0xf]
    %v629 = vld [vmem:[#allocation4 + $0xc8] sm:$0xf]
    %v630 = vld [vmem:[#allocation4 + $0xcc] sm:$0xf]
    %v631 = vld [vmem:[#allocation4 + $0xd0] sm:$0xf]
    %v632 = vld [vmem:[#allocation4 + $0xd4] sm:$0xf]
    %v633 = vld [vmem:[#allocation4 + $0xd8] sm:$0xf]
    %v634 = vld [vmem:[#allocation4 + $0xdc] sm:$0xf]
    %v635 = vld [vmem:[#allocation4 + $0xe0] sm:$0xf]
    %v636 = vld [vmem:[#allocation4 + $0xe4] sm:$0xf]
    %v637 = vld [vmem:[#allocation4 + $0xe8] sm:$0xf]
    %v638 = vld [vmem:[#allocation4 + $0xec] sm:$0xf]
    %v639 = vld [vmem:[#allocation4 + $0xf0] sm:$0xf]
    %v640 = vld [vmem:[#allocation4 + $0xf4] sm:$0xf]
    %v641 = vld [vmem:[#allocation4 + $0xf8] sm:$0xf]
    %v642 = vld [vmem:[#allocation4 + $0xfc] sm:$0xf]
    %v643 = vld [vmem:[#allocation4 + $0x100] sm:$0xf]
    %v644 = vld [vmem:[#allocation4 + $0x104] sm:$0xf]
    %v645 = vld [vmem:[#allocation4 + $0x108] sm:$0xf]
    %v646 = vld [vmem:[#allocation4 + $0x10c] sm:$0xf]
    %v647 = vld [vmem:[#allocation4 + $0x110] sm:$0xf]
    %v648 = vld [vmem:[#allocation4 + $0x114] sm:$0xf]
    %v649 = vld [vmem:[#allocation4 + $0x118] sm:$0xf]
    %v650 = vld [vmem:[#allocation4 + $0x11c] sm:$0xf]
    %v651 = vld [vmem:[#allocation4 + $0x120] sm:$0xf]
    %v652 = vld [vmem:[#allocation4 + $0x124] sm:$0xf]
    %v653 = vld [vmem:[#allocation4 + $0x128] sm:$0xf]
    %v654 = vld [vmem:[#allocation4 + $0x12c] sm:$0xf]
    %v655 = vld [vmem:[#allocation4 + $0x130] sm:$0xf]
    %v656 = vld [vmem:[#allocation4 + $0x134] sm:$0xf]
    %v657 = vld [vmem:[#allocation4 + $0x138] sm:$0xf]
    %v658 = vld [vmem:[#allocation4 + $0x13c] sm:$0xf]
    %v659 = vld [vmem:[#allocation4 + $0x140] sm:$0xf]
    %v660 = vld [vmem:[#allocation4 + $0x144] sm:$0xf]
    %v661 = vld [vmem:[#allocation4 + $0x148] sm:$0xf]
    %v662 = vld [vmem:[#allocation4 + $0x14c] sm:$0xf]
    %v663 = vld [vmem:[#allocation4 + $0x150] sm:$0xf]
    %v664 = vld [vmem:[#allocation4 + $0x154] sm:$0xf]
    %v665 = vld [vmem:[#allocation4 + $0x158] sm:$0xf]
    %v666 = vld [vmem:[#allocation4 + $0x15c] sm:$0xf]
    %v667 = vld [vmem:[#allocation4 + $0x160] sm:$0xf]
    %v668 = vld [vmem:[#allocation4 + $0x164] sm:$0xf]
    %v669 = vld [vmem:[#allocation4 + $0x168] sm:$0xf]
    %v670 = vld [vmem:[#allocation4 + $0x16c] sm:$0xf]
    %v671 = vld [vmem:[#allocation4 + $0x170] sm:$0xf]
    %v672 = vld [vmem:[#allocation4 + $0x174] sm:$0xf]
    %v673 = vld [vmem:[#allocation4 + $0x178] sm:$0xf]
    %v674 = vld [vmem:[#allocation4 + $0x17c] sm:$0xf]
    %v675 = vld [vmem:[#allocation4 + $0x180] sm:$0xf]
    %v676 = vld [vmem:[#allocation4 + $0x184] sm:$0xf]
    %v677 = vld [vmem:[#allocation4 + $0x188] sm:$0xf]
    %v678 = vld [vmem:[#allocation4 + $0x18c] sm:$0xf]
    %v679 = vld [vmem:[#allocation4 + $0x190] sm:$0xf]
    %v680 = vld [vmem:[#allocation4 + $0x194] sm:$0xf]
    %v681 = vld [vmem:[#allocation4 + $0x198] sm:$0xf]
    %v682 = vld [vmem:[#allocation4 + $0x19c] sm:$0xf]
    %v683 = vld [vmem:[#allocation4 + $0x1a0] sm:$0xf]
    %v684 = vld [vmem:[#allocation4 + $0x1a4] sm:$0xf]
    %v685 = vld [vmem:[#allocation4 + $0x1a8] sm:$0xf]
    %v686 = vld [vmem:[#allocation4 + $0x1ac] sm:$0xf]
    %v687 = vld [vmem:[#allocation4 + $0x1b0] sm:$0xf]
    %v688 = vld [vmem:[#allocation4 + $0x1b4] sm:$0xf]
    %v689 = vld [vmem:[#allocation4 + $0x1b8] sm:$0xf]
    %v690 = vld [vmem:[#allocation4 + $0x1bc] sm:$0xf]
    %v691 = vld [vmem:[#allocation4 + $0x1c0] sm:$0xf]
    %v692 = vld [vmem:[#allocation4 + $0x1c4] sm:$0xf]
    %v693 = vld [vmem:[#allocation4 + $0x1c8] sm:$0xf]
    %v694 = vld [vmem:[#allocation4 + $0x1cc] sm:$0xf]
    %v695 = vld [vmem:[#allocation4 + $0x1d0] sm:$0xf]
    %v696 = vld [vmem:[#allocation4 + $0x1d4] sm:$0xf]
    %v697 = vld [vmem:[#allocation4 + $0x1d8] sm:$0xf]
    %v698 = vld [vmem:[#allocation4 + $0x1dc] sm:$0xf]
    %v699 = vld [vmem:[#allocation4 + $0x1e0] sm:$0xf]
    %v700 = vld [vmem:[#allocation4 + $0x1e4] sm:$0xf]
    %v701 = vld [vmem:[#allocation4 + $0x1e8] sm:$0xf]
    %v702 = vld [vmem:[#allocation4 + $0x1ec] sm:$0xf]
    %v703 = vld [vmem:[#allocation4 + $0x1f0] sm:$0xf]
    %v704 = vld [vmem:[#allocation4 + $0x1f4] sm:$0xf]
    %v705 = vld [vmem:[#allocation4 + $0x1f8] sm:$0xf]
    %v706 = vld [vmem:[#allocation4 + $0x1fc] sm:$0xf]
    %v707 = vld [vmem:[#allocation4 + $0x200] sm:$0xf]
    %v708 = vld [vmem:[#allocation4 + $0x204] sm:$0xf]
    %v709 = vld [vmem:[#allocation4 + $0x208] sm:$0xf]
    %v710 = vld [vmem:[#allocation4 + $0x20c] sm:$0xf]
    %v711 = vld [vmem:[#allocation4 + $0x210] sm:$0xf]
    %v712 = vld [vmem:[#allocation4 + $0x214] sm:$0xf]
    %v713 = vld [vmem:[#allocation4 + $0x218] sm:$0xf]
    %v714 = vld [vmem:[#allocation4 + $0x21c] sm:$0xf]
    %v715 = vld [vmem:[#allocation4 + $0x220] sm:$0xf]
    %v716 = vld [vmem:[#allocation4 + $0x224] sm:$0xf]
    %v717 = vld [vmem:[#allocation4 + $0x228] sm:$0xf]
    %v718 = vld [vmem:[#allocation4 + $0x22c] sm:$0xf]
    %v719 = vld [vmem:[#allocation4 + $0x230] sm:$0xf]
    %v720 = vld [vmem:[#allocation4 + $0x234] sm:$0xf]
    %v721 = vld [vmem:[#allocation4 + $0x238] sm:$0xf]
    %v722 = vld [vmem:[#allocation4 + $0x23c] sm:$0xf]
    %v723 = vld [vmem:[#allocation4 + $0x240] sm:$0xf]
    %v724 = vld [vmem:[#allocation4 + $0x244] sm:$0xf]
    %v725 = vld [vmem:[#allocation4 + $0x248] sm:$0xf]
    %v726 = vld [vmem:[#allocation4 + $0x24c] sm:$0xf]
    %v727 = vld [vmem:[#allocation4 + $0x250] sm:$0xf]
    %v728 = vld [vmem:[#allocation4 + $0x254] sm:$0xf]
    %v729 = vld [vmem:[#allocation4 + $0x258] sm:$0xf]
    %v730 = vld [vmem:[#allocation4 + $0x25c] sm:$0xf]
    %v731 = vld [vmem:[#allocation4 + $0x260] sm:$0xf]
    %v732 = vld [vmem:[#allocation4 + $0x264] sm:$0xf]
    %v733 = vld [vmem:[#allocation4 + $0x268] sm:$0xf]
    %v734 = vld [vmem:[#allocation4 + $0x26c] sm:$0xf]
    %v735 = vld [vmem:[#allocation4 + $0x270] sm:$0xf]
    %v736 = vld [vmem:[#allocation4 + $0x274] sm:$0xf]
    %v737 = vld [vmem:[#allocation4 + $0x278] sm:$0xf]
    %v738 = vld [vmem:[#allocation4 + $0x27c] sm:$0xf]
    %v739 = vld [vmem:[#allocation4 + $0x280] sm:$0xf]
    %v740 = vld [vmem:[#allocation4 + $0x284] sm:$0xf]
    %v741 = vld [vmem:[#allocation4 + $0x288] sm:$0xf]
    %v742 = vld [vmem:[#allocation4 + $0x28c] sm:$0xf]
    %v743 = vld [vmem:[#allocation4 + $0x290] sm:$0xf]
    %v744 = vld [vmem:[#allocation4 + $0x294] sm:$0xf]
    %v745 = vld [vmem:[#allocation4 + $0x298] sm:$0xf]
    %v746 = vld [vmem:[#allocation4 + $0x29c] sm:$0xf]
    %v747 = vld [vmem:[#allocation4 + $0x2a0] sm:$0xf]
    %v748 = vld [vmem:[#allocation4 + $0x2a4] sm:$0xf]
    %v749 = vld [vmem:[#allocation4 + $0x2a8] sm:$0xf]
    %v750 = vld [vmem:[#allocation4 + $0x2ac] sm:$0xf]
    %v751 = vld [vmem:[#allocation4 + $0x2b0] sm:$0xf]
    %v752 = vld [vmem:[#allocation4 + $0x2b4] sm:$0xf]
    %v753 = vld [vmem:[#allocation4 + $0x2b8] sm:$0xf]
    %v754 = vld [vmem:[#allocation4 + $0x2bc] sm:$0xf]
    %v755 = vld [vmem:[#allocation4 + $0x2c0] sm:$0xf]
    %v756 = vld [vmem:[#allocation4 + $0x2c4] sm:$0xf]
    %v757 = vld [vmem:[#allocation4 + $0x2c8] sm:$0xf]
    %v758 = vld [vmem:[#allocation4 + $0x2cc] sm:$0xf]
    %v759 = vld [vmem:[#allocation4 + $0x2d0] sm:$0xf]
    %v760 = vld [vmem:[#allocation4 + $0x2d4] sm:$0xf]
    %v761 = vld [vmem:[#allocation4 + $0x2d8] sm:$0xf]
    %v762 = vld [vmem:[#allocation4 + $0x2dc] sm:$0xf]
    %v763 = vld [vmem:[#allocation4 + $0x2e0] sm:$0xf]
    %v764 = vld [vmem:[#allocation4 + $0x2e4] sm:$0xf]
    %v765 = vld [vmem:[#allocation4 + $0x2e8] sm:$0xf]
    %v766 = vld [vmem:[#allocation4 + $0x2ec] sm:$0xf]
    %v767 = vld [vmem:[#allocation4 + $0x2f0] sm:$0xf]
    %v768 = vld [vmem:[#allocation4 + $0x2f4] sm:$0xf]
    %v769 = vld [vmem:[#allocation4 + $0x2f8] sm:$0xf]
    %v770 = vld [vmem:[#allocation4 + $0x2fc] sm:$0xf]
    %v771 = vld [vmem:[#allocation4 + $0x300] sm:$0xf]
    %v772 = vld [vmem:[#allocation4 + $0x304] sm:$0xf]
    %v773 = vld [vmem:[#allocation4 + $0x308] sm:$0xf]
    %v774 = vld [vmem:[#allocation4 + $0x30c] sm:$0xf]
    %v775 = vld [vmem:[#allocation4 + $0x310] sm:$0xf]
    %v776 = vld [vmem:[#allocation4 + $0x314] sm:$0xf]
    %v777 = vld [vmem:[#allocation4 + $0x318] sm:$0xf]
    %v778 = vld [vmem:[#allocation4 + $0x31c] sm:$0xf]
    %v779 = vld [vmem:[#allocation4 + $0x320] sm:$0xf]
    %v780 = vld [vmem:[#allocation4 + $0x324] sm:$0xf]
    %v781 = vld [vmem:[#allocation4 + $0x328] sm:$0xf]
    %v782 = vld [vmem:[#allocation4 + $0x32c] sm:$0xf]
    %v783 = vld [vmem:[#allocation4 + $0x330] sm:$0xf]
    %v784 = vld [vmem:[#allocation4 + $0x334] sm:$0xf]
    %v785 = vld [vmem:[#allocation4 + $0x338] sm:$0xf]
    %v786 = vld [vmem:[#allocation4 + $0x33c] sm:$0xf]
    %v787 = vld [vmem:[#allocation4 + $0x340] sm:$0xf]
    %v788 = vld [vmem:[#allocation4 + $0x344] sm:$0xf]
    %v789 = vld [vmem:[#allocation4 + $0x348] sm:$0xf]
    %v790 = vld [vmem:[#allocation4 + $0x34c] sm:$0xf]
    %v791 = vld [vmem:[#allocation4 + $0x350] sm:$0xf]
    %v792 = vld [vmem:[#allocation4 + $0x354] sm:$0xf]
    %v793 = vld [vmem:[#allocation4 + $0x358] sm:$0xf]
    %v794 = vld [vmem:[#allocation4 + $0x35c] sm:$0xf]
    %v795 = vld [vmem:[#allocation4 + $0x360] sm:$0xf]
    %v796 = vld [vmem:[#allocation4 + $0x364] sm:$0xf]
    %v797 = vld [vmem:[#allocation4 + $0x368] sm:$0xf]
    %v798 = vld [vmem:[#allocation4 + $0x36c] sm:$0xf]
    %v799 = vld [vmem:[#allocation4 + $0x370] sm:$0xf]
    %v800 = vld [vmem:[#allocation4 + $0x374] sm:$0xf]
    %v801 = vld [vmem:[#allocation4 + $0x378] sm:$0xf]
    %v802 = vld [vmem:[#allocation4 + $0x37c] sm:$0xf]
    %v803 = vld [vmem:[#allocation4 + $0x380] sm:$0xf]
    %v804 = vld [vmem:[#allocation4 + $0x384] sm:$0xf]
    %v805 = vld [vmem:[#allocation4 + $0x388] sm:$0xf]
    %v806 = vld [vmem:[#allocation4 + $0x38c] sm:$0xf]
    %v807 = vld [vmem:[#allocation4 + $0x390] sm:$0xf]
    %v808 = vld [vmem:[#allocation4 + $0x394] sm:$0xf]
    %v809 = vld [vmem:[#allocation4 + $0x398] sm:$0xf]
    %v810 = vld [vmem:[#allocation4 + $0x39c] sm:$0xf]
    %v811 = vld [vmem:[#allocation4 + $0x3a0] sm:$0xf]
    %v812 = vld [vmem:[#allocation4 + $0x3a4] sm:$0xf]
    %v813 = vld [vmem:[#allocation4 + $0x3a8] sm:$0xf]
    %v814 = vld [vmem:[#allocation4 + $0x3ac] sm:$0xf]
    %v815 = vld [vmem:[#allocation4 + $0x3b0] sm:$0xf]
    %v816 = vld [vmem:[#allocation4 + $0x3b4] sm:$0xf]
    %v817 = vld [vmem:[#allocation4 + $0x3b8] sm:$0xf]
    %v818 = vld [vmem:[#allocation4 + $0x3bc] sm:$0xf]
    %v819 = vld [vmem:[#allocation4 + $0x3c0] sm:$0xf]
    %v820 = vld [vmem:[#allocation4 + $0x3c4] sm:$0xf]
    %v821 = vld [vmem:[#allocation4 + $0x3c8] sm:$0xf]
    %v822 = vld [vmem:[#allocation4 + $0x3cc] sm:$0xf]
    %v823 = vld [vmem:[#allocation4 + $0x3d0] sm:$0xf]
    %v824 = vld [vmem:[#allocation4 + $0x3d4] sm:$0xf]
    %v825 = vld [vmem:[#allocation4 + $0x3d8] sm:$0xf]
    %v826 = vld [vmem:[#allocation4 + $0x3dc] sm:$0xf]
    %v827 = vld [vmem:[#allocation4 + $0x3e0] sm:$0xf]
    %v828 = vld [vmem:[#allocation4 + $0x3e4] sm:$0xf]
    %v829 = vld [vmem:[#allocation4 + $0x3e8] sm:$0xf]
    %v830 = vld [vmem:[#allocation4 + $0x3ec] sm:$0xf]
    %v831 = vld [vmem:[#allocation4 + $0x3f0] sm:$0xf]
    %v832 = vld [vmem:[#allocation4 + $0x3f4] sm:$0xf]
    %v833 = vld [vmem:[#allocation4 + $0x3f8] sm:$0xf]
    %v834 = vld [vmem:[#allocation4 + $0x3fc] sm:$0xf]
    %v835 = vperm.slane %v63, 1
    %v1092 = vunpack.c.l.b16 %v579
    %v1093 = vunpack.c.l.b16 %v580
    %v1094 = vunpack.c.l.b16 %v581
    %v1095 = vunpack.c.l.b16 %v582
    %v1096 = vunpack.c.l.b16 %v583
    %v1097 = vunpack.c.l.b16 %v584
    %v1098 = vunpack.c.l.b16 %v585
    %v1099 = vunpack.c.l.b16 %v586
    %v1100 = vunpack.c.l.b16 %v587
    %v1101 = vunpack.c.l.b16 %v588
    %v1102 = vunpack.c.l.b16 %v589
    %v1103 = vunpack.c.l.b16 %v590
    %v1104 = vunpack.c.l.b16 %v591
    %v1105 = vunpack.c.l.b16 %v592
    %v1106 = vunpack.c.l.b16 %v593
    %v1107 = vunpack.c.l.b16 %v594
    %v1108 = vunpack.c.l.b16 %v595
    %v1109 = vunpack.c.l.b16 %v596
    %v1110 = vunpack.c.l.b16 %v597
    %v1111 = vunpack.c.l.b16 %v598
    %v1112 = vunpack.c.l.b16 %v599
    %v1113 = vunpack.c.l.b16 %v600
    %v1114 = vunpack.c.l.b16 %v601
    %v1115 = vunpack.c.l.b16 %v602
    %v1116 = vunpack.c.l.b16 %v603
    %v1117 = vunpack.c.l.b16 %v604
    %v1118 = vunpack.c.l.b16 %v605
    %v1119 = vunpack.c.l.b16 %v606
    %v1120 = vunpack.c.l.b16 %v607
    %v1121 = vunpack.c.l.b16 %v608
    %v1122 = vunpack.c.l.b16 %v609
    %v1123 = vunpack.c.l.b16 %v610
    %v1124 = vunpack.c.l.b16 %v611
    %v1125 = vunpack.c.l.b16 %v612
    %v1126 = vunpack.c.l.b16 %v613
    %v1127 = vunpack.c.l.b16 %v614
    %v1128 = vunpack.c.l.b16 %v615
    %v1129 = vunpack.c.l.b16 %v616
    %v1130 = vunpack.c.l.b16 %v617
    %v1131 = vunpack.c.l.b16 %v618
    %v1132 = vunpack.c.l.b16 %v619
    %v1133 = vunpack.c.l.b16 %v620
    %v1134 = vunpack.c.l.b16 %v621
    %v1135 = vunpack.c.l.b16 %v622
    %v1136 = vunpack.c.l.b16 %v623
    %v1137 = vunpack.c.l.b16 %v624
    %v1138 = vunpack.c.l.b16 %v625
    %v1139 = vunpack.c.l.b16 %v626
    %v1140 = vunpack.c.l.b16 %v627
    %v1141 = vunpack.c.l.b16 %v628
    %v1142 = vunpack.c.l.b16 %v629
    %v1143 = vunpack.c.l.b16 %v630
    %v1144 = vunpack.c.l.b16 %v631
    %v1145 = vunpack.c.l.b16 %v632
    %v1146 = vunpack.c.l.b16 %v633
    %v1147 = vunpack.c.l.b16 %v634
    %v1148 = vunpack.c.l.b16 %v635
    %v1149 = vunpack.c.l.b16 %v636
    %v1150 = vunpack.c.l.b16 %v637
    %v1151 = vunpack.c.l.b16 %v638
    %v1152 = vunpack.c.l.b16 %v639
    %v1153 = vunpack.c.l.b16 %v640
    %v1154 = vunpack.c.l.b16 %v641
    %v1155 = vunpack.c.l.b16 %v642
    %v1156 = vunpack.c.l.b16 %v643
    %v1157 = vunpack.c.l.b16 %v644
    %v1158 = vunpack.c.l.b16 %v645
    %v1159 = vunpack.c.l.b16 %v646
    %v1160 = vunpack.c.l.b16 %v647
    %v1161 = vunpack.c.l.b16 %v648
    %v1162 = vunpack.c.l.b16 %v649
    %v1163 = vunpack.c.l.b16 %v650
    %v1164 = vunpack.c.l.b16 %v651
    %v1165 = vunpack.c.l.b16 %v652
    %v1166 = vunpack.c.l.b16 %v653
    %v1167 = vunpack.c.l.b16 %v654
    %v1168 = vunpack.c.l.b16 %v655
    %v1169 = vunpack.c.l.b16 %v656
    %v1170 = vunpack.c.l.b16 %v657
    %v1171 = vunpack.c.l.b16 %v658
    %v1172 = vunpack.c.l.b16 %v659
    %v1173 = vunpack.c.l.b16 %v660
    %v1174 = vunpack.c.l.b16 %v661
    %v1175 = vunpack.c.l.b16 %v662
    %v1176 = vunpack.c.l.b16 %v663
    %v1177 = vunpack.c.l.b16 %v664
    %v1178 = vunpack.c.l.b16 %v665
    %v1179 = vunpack.c.l.b16 %v666
    %v1180 = vunpack.c.l.b16 %v667
    %v1181 = vunpack.c.l.b16 %v668
    %v1182 = vunpack.c.l.b16 %v669
    %v1183 = vunpack.c.l.b16 %v670
    %v1184 = vunpack.c.l.b16 %v671
    %v1185 = vunpack.c.l.b16 %v672
    %v1186 = vunpack.c.l.b16 %v673
    %v1187 = vunpack.c.l.b16 %v674
    %v1188 = vunpack.c.l.b16 %v675
    %v1189 = vunpack.c.l.b16 %v676
    %v1190 = vunpack.c.l.b16 %v677
    %v1191 = vunpack.c.l.b16 %v678
    %v1192 = vunpack.c.l.b16 %v679
    %v1193 = vunpack.c.l.b16 %v680
    %v1194 = vunpack.c.l.b16 %v681
    %v1195 = vunpack.c.l.b16 %v682
    %v1196 = vunpack.c.l.b16 %v683
    %v1197 = vunpack.c.l.b16 %v684
    %v1198 = vunpack.c.l.b16 %v685
    %v1199 = vunpack.c.l.b16 %v686
    %v1200 = vunpack.c.l.b16 %v687
    %v1201 = vunpack.c.l.b16 %v688
    %v1202 = vunpack.c.l.b16 %v689
    %v1203 = vunpack.c.l.b16 %v690
    %v1204 = vunpack.c.l.b16 %v691
    %v1205 = vunpack.c.l.b16 %v692
    %v1206 = vunpack.c.l.b16 %v693
    %v1207 = vunpack.c.l.b16 %v694
    %v1208 = vunpack.c.l.b16 %v695
    %v1209 = vunpack.c.l.b16 %v696
    %v1210 = vunpack.c.l.b16 %v697
    %v1211 = vunpack.c.l.b16 %v698
    %v1212 = vunpack.c.l.b16 %v699
    %v1213 = vunpack.c.l.b16 %v700
    %v1214 = vunpack.c.l.b16 %v701
    %v1215 = vunpack.c.l.b16 %v702
    %v1216 = vunpack.c.l.b16 %v703
    %v1217 = vunpack.c.l.b16 %v704
    %v1218 = vunpack.c.l.b16 %v705
    %v1219 = vunpack.c.l.b16 %v706
    %v1220 = vunpack.c.l.b16 %v707
    %v1221 = vunpack.c.l.b16 %v708
    %v1222 = vunpack.c.l.b16 %v709
    %v1223 = vunpack.c.l.b16 %v710
    %v1224 = vunpack.c.l.b16 %v711
    %v1225 = vunpack.c.l.b16 %v712
    %v1226 = vunpack.c.l.b16 %v713
    %v1227 = vunpack.c.l.b16 %v714
    %v1228 = vunpack.c.l.b16 %v715
    %v1229 = vunpack.c.l.b16 %v716
    %v1230 = vunpack.c.l.b16 %v717
    %v1231 = vunpack.c.l.b16 %v718
    %v1232 = vunpack.c.l.b16 %v719
    %v1233 = vunpack.c.l.b16 %v720
    %v1234 = vunpack.c.l.b16 %v721
    %v1235 = vunpack.c.l.b16 %v722
    %v1236 = vunpack.c.l.b16 %v723
    %v1237 = vunpack.c.l.b16 %v724
    %v1238 = vunpack.c.l.b16 %v725
    %v1239 = vunpack.c.l.b16 %v726
    %v1240 = vunpack.c.l.b16 %v727
    %v1241 = vunpack.c.l.b16 %v728
    %v1242 = vunpack.c.l.b16 %v729
    %v1243 = vunpack.c.l.b16 %v730
    %v1244 = vunpack.c.l.b16 %v731
    %v1245 = vunpack.c.l.b16 %v732
    %v1246 = vunpack.c.l.b16 %v733
    %v1247 = vunpack.c.l.b16 %v734
    %v1248 = vunpack.c.l.b16 %v735
    %v1249 = vunpack.c.l.b16 %v736
    %v1250 = vunpack.c.l.b16 %v737
    %v1251 = vunpack.c.l.b16 %v738
    %v1252 = vunpack.c.l.b16 %v739
    %v1253 = vunpack.c.l.b16 %v740
    %v1254 = vunpack.c.l.b16 %v741
    %v1255 = vunpack.c.l.b16 %v742
    %v1256 = vunpack.c.l.b16 %v743
    %v1257 = vunpack.c.l.b16 %v744
    %v1258 = vunpack.c.l.b16 %v745
    %v1259 = vunpack.c.l.b16 %v746
    %v1260 = vunpack.c.l.b16 %v747
    %v1261 = vunpack.c.l.b16 %v748
    %v1262 = vunpack.c.l.b16 %v749
    %v1263 = vunpack.c.l.b16 %v750
    %v1264 = vunpack.c.l.b16 %v751
    %v1265 = vunpack.c.l.b16 %v752
    %v1266 = vunpack.c.l.b16 %v753
    %v1267 = vunpack.c.l.b16 %v754
    %v1268 = vunpack.c.l.b16 %v755
    %v1269 = vunpack.c.l.b16 %v756
    %v1270 = vunpack.c.l.b16 %v757
    %v1271 = vunpack.c.l.b16 %v758
    %v1272 = vunpack.c.l.b16 %v759
    %v1273 = vunpack.c.l.b16 %v760
    %v1274 = vunpack.c.l.b16 %v761
    %v1275 = vunpack.c.l.b16 %v762
    %v1276 = vunpack.c.l.b16 %v763
    %v1277 = vunpack.c.l.b16 %v764
    %v1278 = vunpack.c.l.b16 %v765
    %v1279 = vunpack.c.l.b16 %v766
    %v1280 = vunpack.c.l.b16 %v767
    %v1281 = vunpack.c.l.b16 %v768
    %v1282 = vunpack.c.l.b16 %v769
    %v1283 = vunpack.c.l.b16 %v770
    %v1284 = vunpack.c.l.b16 %v771
    %v1285 = vunpack.c.l.b16 %v772
    %v1286 = vunpack.c.l.b16 %v773
    %v1287 = vunpack.c.l.b16 %v774
    %v1288 = vunpack.c.l.b16 %v775
    %v1289 = vunpack.c.l.b16 %v776
    %v1290 = vunpack.c.l.b16 %v777
    %v1291 = vunpack.c.l.b16 %v778
    %v1292 = vunpack.c.l.b16 %v779
    %v1293 = vunpack.c.l.b16 %v780
    %v1294 = vunpack.c.l.b16 %v781
    %v1295 = vunpack.c.l.b16 %v782
    %v1296 = vunpack.c.l.b16 %v783
    %v1297 = vunpack.c.l.b16 %v784
    %v1298 = vunpack.c.l.b16 %v785
    %v1299 = vunpack.c.l.b16 %v786
    %v1300 = vunpack.c.l.b16 %v787
    %v1301 = vunpack.c.l.b16 %v788
    %v1302 = vunpack.c.l.b16 %v789
    %v1303 = vunpack.c.l.b16 %v790
    %v1304 = vunpack.c.l.b16 %v791
    %v1305 = vunpack.c.l.b16 %v792
    %v1306 = vunpack.c.l.b16 %v793
    %v1307 = vunpack.c.l.b16 %v794
    %v1308 = vunpack.c.l.b16 %v795
    %v1309 = vunpack.c.l.b16 %v796
    %v1310 = vunpack.c.l.b16 %v797
    %v1311 = vunpack.c.l.b16 %v798
    %v1312 = vunpack.c.l.b16 %v799
    %v1313 = vunpack.c.l.b16 %v800
    %v1314 = vunpack.c.l.b16 %v801
    %v1315 = vunpack.c.l.b16 %v802
    %v1316 = vunpack.c.l.b16 %v803
    %v1317 = vunpack.c.l.b16 %v804
    %v1318 = vunpack.c.l.b16 %v805
    %v1319 = vunpack.c.l.b16 %v806
    %v1320 = vunpack.c.l.b16 %v807
    %v1321 = vunpack.c.l.b16 %v808
    %v1322 = vunpack.c.l.b16 %v809
    %v1323 = vunpack.c.l.b16 %v810
    %v1324 = vunpack.c.l.b16 %v811
    %v1325 = vunpack.c.l.b16 %v812
    %v1326 = vunpack.c.l.b16 %v813
    %v1327 = vunpack.c.l.b16 %v814
    %v1328 = vunpack.c.l.b16 %v815
    %v1329 = vunpack.c.l.b16 %v816
    %v1330 = vunpack.c.l.b16 %v817
    %v1331 = vunpack.c.l.b16 %v818
    %v1332 = vunpack.c.l.b16 %v819
    %v1333 = vunpack.c.l.b16 %v820
    %v1334 = vunpack.c.l.b16 %v821
    %v1335 = vunpack.c.l.b16 %v822
    %v1336 = vunpack.c.l.b16 %v823
    %v1337 = vunpack.c.l.b16 %v824
    %v1338 = vunpack.c.l.b16 %v825
    %v1339 = vunpack.c.l.b16 %v826
    %v1340 = vunpack.c.l.b16 %v827
    %v1341 = vunpack.c.l.b16 %v828
    %v1342 = vunpack.c.l.b16 %v829
    %v1343 = vunpack.c.l.b16 %v830
    %v1344 = vunpack.c.l.b16 %v831
    %v1345 = vunpack.c.l.b16 %v832
    %v1346 = vunpack.c.l.b16 %v833
    %v1347 = vunpack.c.l.b16 %v834
    %v1348 = vpack.c.b16 %v1093, %v1092
    %v1349 = vpack.c.b16 %v1095, %v1094
    %v1350 = vpack.c.b16 %v1097, %v1096
    %v1351 = vpack.c.b16 %v1099, %v1098
    %v1352 = vpack.c.b16 %v1101, %v1100
    %v1353 = vpack.c.b16 %v1103, %v1102
    %v1354 = vpack.c.b16 %v1105, %v1104
    %v1355 = vpack.c.b16 %v1107, %v1106
    %v1356 = vpack.c.b16 %v1109, %v1108
    %v1357 = vpack.c.b16 %v1111, %v1110
    %v1358 = vpack.c.b16 %v1113, %v1112
    %v1359 = vpack.c.b16 %v1115, %v1114
    %v1360 = vpack.c.b16 %v1117, %v1116
    %v1361 = vpack.c.b16 %v1119, %v1118
    %v1362 = vpack.c.b16 %v1121, %v1120
    %v1363 = vpack.c.b16 %v1123, %v1122
    %v1364 = vpack.c.b16 %v1125, %v1124
    %v1365 = vpack.c.b16 %v1127, %v1126
    %v1366 = vpack.c.b16 %v1129, %v1128
    %v1367 = vpack.c.b16 %v1131, %v1130
    %v1368 = vpack.c.b16 %v1133, %v1132
    %v1369 = vpack.c.b16 %v1135, %v1134
    %v1370 = vpack.c.b16 %v1137, %v1136
    %v1371 = vpack.c.b16 %v1139, %v1138
    %v1372 = vpack.c.b16 %v1141, %v1140
    %v1373 = vpack.c.b16 %v1143, %v1142
    %v1374 = vpack.c.b16 %v1145, %v1144
    %v1375 = vpack.c.b16 %v1147, %v1146
    %v1376 = vpack.c.b16 %v1149, %v1148
    %v1377 = vpack.c.b16 %v1151, %v1150
    %v1378 = vpack.c.b16 %v1153, %v1152
    %v1379 = vpack.c.b16 %v1155, %v1154
    %v1380 = vpack.c.b16 %v1157, %v1156
    %v1381 = vpack.c.b16 %v1159, %v1158
    %v1382 = vpack.c.b16 %v1161, %v1160
    %v1383 = vpack.c.b16 %v1163, %v1162
    %v1384 = vpack.c.b16 %v1165, %v1164
    %v1385 = vpack.c.b16 %v1167, %v1166
    %v1386 = vpack.c.b16 %v1169, %v1168
    %v1387 = vpack.c.b16 %v1171, %v1170
    %v1388 = vpack.c.b16 %v1173, %v1172
    %v1389 = vpack.c.b16 %v1175, %v1174
    %v1390 = vpack.c.b16 %v1177, %v1176
    %v1391 = vpack.c.b16 %v1179, %v1178
    %v1392 = vpack.c.b16 %v1181, %v1180
    %v1393 = vpack.c.b16 %v1183, %v1182
    %v1394 = vpack.c.b16 %v1185, %v1184
    %v1395 = vpack.c.b16 %v1187, %v1186
    %v1396 = vpack.c.b16 %v1189, %v1188
    %v1397 = vpack.c.b16 %v1191, %v1190
    %v1398 = vpack.c.b16 %v1193, %v1192
    %v1399 = vpack.c.b16 %v1195, %v1194
    %v1400 = vpack.c.b16 %v1197, %v1196
    %v1401 = vpack.c.b16 %v1199, %v1198
    %v1402 = vpack.c.b16 %v1201, %v1200
    %v1403 = vpack.c.b16 %v1203, %v1202
    %v1404 = vpack.c.b16 %v1205, %v1204
    %v1405 = vpack.c.b16 %v1207, %v1206
    %v1406 = vpack.c.b16 %v1209, %v1208
    %v1407 = vpack.c.b16 %v1211, %v1210
    %v1408 = vpack.c.b16 %v1213, %v1212
    %v1409 = vpack.c.b16 %v1215, %v1214
    %v1410 = vpack.c.b16 %v1217, %v1216
    %v1411 = vpack.c.b16 %v1219, %v1218
    %v1412 = vpack.c.b16 %v1221, %v1220
    %v1413 = vpack.c.b16 %v1223, %v1222
    %v1414 = vpack.c.b16 %v1225, %v1224
    %v1415 = vpack.c.b16 %v1227, %v1226
    %v1416 = vpack.c.b16 %v1229, %v1228
    %v1417 = vpack.c.b16 %v1231, %v1230
    %v1418 = vpack.c.b16 %v1233, %v1232
    %v1419 = vpack.c.b16 %v1235, %v1234
    %v1420 = vpack.c.b16 %v1237, %v1236
    %v1421 = vpack.c.b16 %v1239, %v1238
    %v1422 = vpack.c.b16 %v1241, %v1240
    %v1423 = vpack.c.b16 %v1243, %v1242
    %v1424 = vpack.c.b16 %v1245, %v1244
    %v1425 = vpack.c.b16 %v1247, %v1246
    %v1426 = vpack.c.b16 %v1249, %v1248
    %v1427 = vpack.c.b16 %v1251, %v1250
    %v1428 = vpack.c.b16 %v1253, %v1252
    %v1429 = vpack.c.b16 %v1255, %v1254
    %v1430 = vpack.c.b16 %v1257, %v1256
    %v1431 = vpack.c.b16 %v1259, %v1258
    %v1432 = vpack.c.b16 %v1261, %v1260
    %v1433 = vpack.c.b16 %v1263, %v1262
    %v1434 = vpack.c.b16 %v1265, %v1264
    %v1435 = vpack.c.b16 %v1267, %v1266
    %v1436 = vpack.c.b16 %v1269, %v1268
    %v1437 = vpack.c.b16 %v1271, %v1270
    %v1438 = vpack.c.b16 %v1273, %v1272
    %v1439 = vpack.c.b16 %v1275, %v1274
    %v1440 = vpack.c.b16 %v1277, %v1276
    %v1441 = vpack.c.b16 %v1279, %v1278
    %v1442 = vpack.c.b16 %v1281, %v1280
    %v1443 = vpack.c.b16 %v1283, %v1282
    %v1444 = vpack.c.b16 %v1285, %v1284
    %v1445 = vpack.c.b16 %v1287, %v1286
    %v1446 = vpack.c.b16 %v1289, %v1288
    %v1447 = vpack.c.b16 %v1291, %v1290
    %v1448 = vpack.c.b16 %v1293, %v1292
    %v1449 = vpack.c.b16 %v1295, %v1294
    %v1450 = vpack.c.b16 %v1297, %v1296
    %v1451 = vpack.c.b16 %v1299, %v1298
    %v1452 = vpack.c.b16 %v1301, %v1300
    %v1453 = vpack.c.b16 %v1303, %v1302
    %v1454 = vpack.c.b16 %v1305, %v1304
    %v1455 = vpack.c.b16 %v1307, %v1306
    %v1456 = vpack.c.b16 %v1309, %v1308
    %v1457 = vpack.c.b16 %v1311, %v1310
    %v1458 = vpack.c.b16 %v1313, %v1312
    %v1459 = vpack.c.b16 %v1315, %v1314
    %v1460 = vpack.c.b16 %v1317, %v1316
    %v1461 = vpack.c.b16 %v1319, %v1318
    %v1462 = vpack.c.b16 %v1321, %v1320
    %v1463 = vpack.c.b16 %v1323, %v1322
    %v1464 = vpack.c.b16 %v1325, %v1324
    %v1465 = vpack.c.b16 %v1327, %v1326
    %v1466 = vpack.c.b16 %v1329, %v1328
    %v1467 = vpack.c.b16 %v1331, %v1330
    %v1468 = vpack.c.b16 %v1333, %v1332
    %v1469 = vpack.c.b16 %v1335, %v1334
    %v1470 = vpack.c.b16 %v1337, %v1336
    %v1471 = vpack.c.b16 %v1339, %v1338
    %v1472 = vpack.c.b16 %v1341, %v1340
    %v1473 = vpack.c.b16 %v1343, %v1342
    %v1474 = vpack.c.b16 %v1345, %v1344
    %v1475 = vpack.c.b16 %v1347, %v1346
    %1604 = vmatpush.bf16.msra.mxu0 %v1355
    %1605 = vmatpush.bf16.msra.mxu0 %v1354
    %1606 = vmatpush.bf16.msra.mxu0 %v1353
    %1607 = vmatpush.bf16.msra.mxu0 %v1352
    %1608 = vmatpush.bf16.msra.mxu0 %v1351
    %1609 = vmatpush.bf16.msra.mxu0 %v1350
    %1610 = vmatpush.bf16.msra.mxu0 %v1349
    %1611 = vmatpush.bf16.msra.mxu0 %v1348
    %1612 = vmatmul.bf16.gmra.mxu0 %v563
    %v1613 = vpop.f32.mrf.mxu0
    %v1614 = vadd.f32 %v835, %v1613
    %v1615 = vpop.f32.mrf.mxu0
    %1616 = vdwg.mxu0
    %1617 = vmatpush.bf16.msra.mxu0 %v1363
    %1618 = vmatpush.bf16.msra.mxu0 %v1362
    %1619 = vmatpush.bf16.msra.mxu0 %v1361
    %1620 = vmatpush.bf16.msra.mxu0 %v1360
    %1621 = vmatpush.bf16.msra.mxu0 %v1359
    %1622 = vmatpush.bf16.msra.mxu0 %v1358
    %1623 = vmatpush.bf16.msra.mxu0 %v1357
    %1624 = vmatpush.bf16.msra.mxu0 %v1356
    %1625 = vmatmul.bf16.gmra.mxu0 %v564
    %v1626 = vpop.f32.mrf.mxu0
    %v1627 = vadd.f32 %v1614, %v1626
    %v1628 = vpop.f32.mrf.mxu0
    %1629 = vdwg.mxu0
    %1630 = vmatpush.bf16.msra.mxu0 %v1371
    %1631 = vmatpush.bf16.msra.mxu0 %v1370
    %1632 = vmatpush.bf16.msra.mxu0 %v1369
    %1633 = vmatpush.bf16.msra.mxu0 %v1368
    %1634 = vmatpush.bf16.msra.mxu0 %v1367
    %1635 = vmatpush.bf16.msra.mxu0 %v1366
    %1636 = vmatpush.bf16.msra.mxu0 %v1365
    %1637 = vmatpush.bf16.msra.mxu0 %v1364
    %1638 = vmatmul.bf16.gmra.mxu0 %v565
    %v1639 = vpop.f32.mrf.mxu0
    %v1640 = vadd.f32 %v1627, %v1639
    %v1641 = vpop.f32.mrf.mxu0
    %1642 = vdwg.mxu0
    %1643 = vmatpush.bf16.msra.mxu0 %v1379
    %1644 = vmatpush.bf16.msra.mxu0 %v1378
    %1645 = vmatpush.bf16.msra.mxu0 %v1377
    %1646 = vmatpush.bf16.msra.mxu0 %v1376
    %1647 = vmatpush.bf16.msra.mxu0 %v1375
    %1648 = vmatpush.bf16.msra.mxu0 %v1374
    %1649 = vmatpush.bf16.msra.mxu0 %v1373
    %1650 = vmatpush.bf16.msra.mxu0 %v1372
    %1651 = vmatmul.bf16.gmra.mxu0 %v566
    %v1652 = vpop.f32.mrf.mxu0
    %v1653 = vadd.f32 %v1640, %v1652
    %v1654 = vpop.f32.mrf.mxu0
    %1655 = vdwg.mxu0
    %1656 = vmatpush.bf16.msra.mxu0 %v1387
    %1657 = vmatpush.bf16.msra.mxu0 %v1386
    %1658 = vmatpush.bf16.msra.mxu0 %v1385
    %1659 = vmatpush.bf16.msra.mxu0 %v1384
    %1660 = vmatpush.bf16.msra.mxu0 %v1383
    %1661 = vmatpush.bf16.msra.mxu0 %v1382
    %1662 = vmatpush.bf16.msra.mxu0 %v1381
    %1663 = vmatpush.bf16.msra.mxu0 %v1380
    %1664 = vmatmul.bf16.gmra.mxu0 %v567
    %v1665 = vpop.f32.mrf.mxu0
    %v1666 = vadd.f32 %v1653, %v1665
    %v1667 = vpop.f32.mrf.mxu0
    %1668 = vdwg.mxu0
    %1669 = vmatpush.bf16.msra.mxu0 %v1395
    %1670 = vmatpush.bf16.msra.mxu0 %v1394
    %1671 = vmatpush.bf16.msra.mxu0 %v1393
    %1672 = vmatpush.bf16.msra.mxu0 %v1392
    %1673 = vmatpush.bf16.msra.mxu0 %v1391
    %1674 = vmatpush.bf16.msra.mxu0 %v1390
    %1675 = vmatpush.bf16.msra.mxu0 %v1389
    %1676 = vmatpush.bf16.msra.mxu0 %v1388
    %1677 = vmatmul.bf16.gmra.mxu0 %v568
    %v1678 = vpop.f32.mrf.mxu0
    %v1679 = vadd.f32 %v1666, %v1678
    %v1680 = vpop.f32.mrf.mxu0
    %1681 = vdwg.mxu0
    %1682 = vmatpush.bf16.msra.mxu0 %v1403
    %1683 = vmatpush.bf16.msra.mxu0 %v1402
    %1684 = vmatpush.bf16.msra.mxu0 %v1401
    %1685 = vmatpush.bf16.msra.mxu0 %v1400
    %1686 = vmatpush.bf16.msra.mxu0 %v1399
    %1687 = vmatpush.bf16.msra.mxu0 %v1398
    %1688 = vmatpush.bf16.msra.mxu0 %v1397
    %1689 = vmatpush.bf16.msra.mxu0 %v1396
    %1690 = vmatmul.bf16.gmra.mxu0 %v569
    %v1691 = vpop.f32.mrf.mxu0
    %v1692 = vadd.f32 %v1679, %v1691
    %v1693 = vpop.f32.mrf.mxu0
    %1694 = vdwg.mxu0
    %1695 = vmatpush.bf16.msra.mxu0 %v1411
    %1696 = vmatpush.bf16.msra.mxu0 %v1410
    %1697 = vmatpush.bf16.msra.mxu0 %v1409
    %1698 = vmatpush.bf16.msra.mxu0 %v1408
    %1699 = vmatpush.bf16.msra.mxu0 %v1407
    %1700 = vmatpush.bf16.msra.mxu0 %v1406
    %1701 = vmatpush.bf16.msra.mxu0 %v1405
    %1702 = vmatpush.bf16.msra.mxu0 %v1404
    %1703 = vmatmul.bf16.gmra.mxu0 %v570
    %v1704 = vpop.f32.mrf.mxu0
    %v1705 = vadd.f32 %v1692, %v1704
    %v1706 = vpop.f32.mrf.mxu0
    %1707 = vdwg.mxu0
    %1708 = vmatpush.bf16.msra.mxu0 %v1419
    %1709 = vmatpush.bf16.msra.mxu0 %v1418
    %1710 = vmatpush.bf16.msra.mxu0 %v1417
    %1711 = vmatpush.bf16.msra.mxu0 %v1416
    %1712 = vmatpush.bf16.msra.mxu0 %v1415
    %1713 = vmatpush.bf16.msra.mxu0 %v1414
    %1714 = vmatpush.bf16.msra.mxu0 %v1413
    %1715 = vmatpush.bf16.msra.mxu0 %v1412
    %1716 = vmatmul.bf16.gmra.mxu0 %v571
    %v1717 = vpop.f32.mrf.mxu0
    %v1718 = vadd.f32 %v1705, %v1717
    %v1719 = vpop.f32.mrf.mxu0
    %1720 = vdwg.mxu0
    %1721 = vmatpush.bf16.msra.mxu0 %v1427
    %1722 = vmatpush.bf16.msra.mxu0 %v1426
    %1723 = vmatpush.bf16.msra.mxu0 %v1425
    %1724 = vmatpush.bf16.msra.mxu0 %v1424
    %1725 = vmatpush.bf16.msra.mxu0 %v1423
    %1726 = vmatpush.bf16.msra.mxu0 %v1422
    %1727 = vmatpush.bf16.msra.mxu0 %v1421
    %1728 = vmatpush.bf16.msra.mxu0 %v1420
    %1729 = vmatmul.bf16.gmra.mxu0 %v572
    %v1730 = vpop.f32.mrf.mxu0
    %v1731 = vadd.f32 %v1718, %v1730
    %v1732 = vpop.f32.mrf.mxu0
    %1733 = vdwg.mxu0
    %1734 = vmatpush.bf16.msra.mxu0 %v1435
    %1735 = vmatpush.bf16.msra.mxu0 %v1434
    %1736 = vmatpush.bf16.msra.mxu0 %v1433
    %1737 = vmatpush.bf16.msra.mxu0 %v1432
    %1738 = vmatpush.bf16.msra.mxu0 %v1431
    %1739 = vmatpush.bf16.msra.mxu0 %v1430
    %1740 = vmatpush.bf16.msra.mxu0 %v1429
    %1741 = vmatpush.bf16.msra.mxu0 %v1428
    %1742 = vmatmul.bf16.gmra.mxu0 %v573
    %v1743 = vpop.f32.mrf.mxu0
    %v1744 = vadd.f32 %v1731, %v1743
    %v1745 = vpop.f32.mrf.mxu0
    %1746 = vdwg.mxu0
    %1747 = vmatpush.bf16.msra.mxu0 %v1443
    %1748 = vmatpush.bf16.msra.mxu0 %v1442
    %1749 = vmatpush.bf16.msra.mxu0 %v1441
    %1750 = vmatpush.bf16.msra.mxu0 %v1440
    %1751 = vmatpush.bf16.msra.mxu0 %v1439
    %1752 = vmatpush.bf16.msra.mxu0 %v1438
    %1753 = vmatpush.bf16.msra.mxu0 %v1437
    %1754 = vmatpush.bf16.msra.mxu0 %v1436
    %1755 = vmatmul.bf16.gmra.mxu0 %v574
    %v1756 = vpop.f32.mrf.mxu0
    %v1757 = vadd.f32 %v1744, %v1756
    %v1758 = vpop.f32.mrf.mxu0
    %1759 = vdwg.mxu0
    %1760 = vmatpush.bf16.msra.mxu0 %v1451
    %1761 = vmatpush.bf16.msra.mxu0 %v1450
    %1762 = vmatpush.bf16.msra.mxu0 %v1449
    %1763 = vmatpush.bf16.msra.mxu0 %v1448
    %1764 = vmatpush.bf16.msra.mxu0 %v1447
    %1765 = vmatpush.bf16.msra.mxu0 %v1446
    %1766 = vmatpush.bf16.msra.mxu0 %v1445
    %1767 = vmatpush.bf16.msra.mxu0 %v1444
    %1768 = vmatmul.bf16.gmra.mxu0 %v575
    %v1769 = vpop.f32.mrf.mxu0
    %v1770 = vadd.f32 %v1757, %v1769
    %v1771 = vpop.f32.mrf.mxu0
    %1772 = vdwg.mxu0
    %1773 = vmatpush.bf16.msra.mxu0 %v1459
    %1774 = vmatpush.bf16.msra.mxu0 %v1458
    %1775 = vmatpush.bf16.msra.mxu0 %v1457
    %1776 = vmatpush.bf16.msra.mxu0 %v1456
    %1777 = vmatpush.bf16.msra.mxu0 %v1455
    %1778 = vmatpush.bf16.msra.mxu0 %v1454
    %1779 = vmatpush.bf16.msra.mxu0 %v1453
    %1780 = vmatpush.bf16.msra.mxu0 %v1452
    %1781 = vmatmul.bf16.gmra.mxu0 %v576
    %v1782 = vpop.f32.mrf.mxu0
    %v1783 = vadd.f32 %v1770, %v1782
    %v1784 = vpop.f32.mrf.mxu0
    %1785 = vdwg.mxu0
    %1786 = vmatpush.bf16.msra.mxu0 %v1467
    %1787 = vmatpush.bf16.msra.mxu0 %v1466
    %1788 = vmatpush.bf16.msra.mxu0 %v1465
    %1789 = vmatpush.bf16.msra.mxu0 %v1464
    %1790 = vmatpush.bf16.msra.mxu0 %v1463
    %1791 = vmatpush.bf16.msra.mxu0 %v1462
    %1792 = vmatpush.bf16.msra.mxu0 %v1461
    %1793 = vmatpush.bf16.msra.mxu0 %v1460
    %1794 = vmatmul.bf16.gmra.mxu0 %v577
    %v1795 = vpop.f32.mrf.mxu0
    %v1796 = vadd.f32 %v1783, %v1795
    %v1797 = vpop.f32.mrf.mxu0
    %1798 = vdwg.mxu0
    %1799 = vmatpush.bf16.msra.mxu0 %v1475
    %1800 = vmatpush.bf16.msra.mxu0 %v1474
    %1801 = vmatpush.bf16.msra.mxu0 %v1473
    %1802 = vmatpush.bf16.msra.mxu0 %v1472
    %1803 = vmatpush.bf16.msra.mxu0 %v1471
    %1804 = vmatpush.bf16.msra.mxu0 %v1470
    %1805 = vmatpush.bf16.msra.mxu0 %v1469
    %1806 = vmatpush.bf16.msra.mxu0 %v1468
    %1807 = vmatmul.bf16.gmra.mxu0 %v578
    %v1808 = vpop.f32.mrf.mxu0
    %v1809 = vadd.f32 %v1796, %v1808
    %v1810 = vpop.f32.mrf.mxu0
    %1811 = vdwg.mxu0
    %v1812 = vmax.f32 %v1809, 0.0
    %v1813 = vperm.slane %v63, 2
    %v1814 = vmul.f32 %v1812, %v1813
    %1815 = vadd.xlane.f32.xlu0 %v1814
    %v1816 = vpop.xlane.xlu0 %1815
    %1817 = vset.pattern.permute.xlu0 0
    %1818 = vperm.xlu0 %1817, %v63
    %v1819 = vpop.permute.xlu0 %1818
    %v1822 = vunpack.c.l.s4 839922192
    %v1823 = vunpack.c.0.s8 %v1822
    %v1824 = vperm.slane %v1819, %v1823
    %v1826 = vperm.slane %v1824, 3
    %v1828 = vadd.f32 %v1816, %v1826
    %1830 = vset.pattern.permute.xlu0 0
    %1831 = vperm.xlu0 %1830, %v1828
    %v1832 = vpop.permute.xlu0 %1831
    %v1833 = vlaneseq
    %v1834 = vand.u32 %v1833, 127
    %v1835 = vperm.slane %v1832, %v1834
    %vm1837 = vcmask 57344
    %1838 = vst.msk [vmem:[%s4] sm:$0x1] %vm1837, %v1835
    // Predicated region
    $region30: #{critic_forward.1} parent=1 // pred_check
      _
    $region31: #{critic_forward.1} parent=1 // pred_check_branch
      %1840 = sbr.rel (0) target = $region33
    $region32: #{critic_forward.1} parent=1 // pred_region
      _
    $region33: #{critic_forward.1} parent=1 // pred_fallthru
      _
    // Predicated region
    $region34: #{critic_forward.1} parent=1 // pred_check
      _
    $region35: #{critic_forward.1} parent=1 // pred_check_branch
      %1842 = sbr.rel (0) target = $region37
    $region36: #{critic_forward.1} parent=1 // pred_region
      _
    $region37: #{critic_forward.1} parent=1 // pred_fallthru
      _
    %1843 = vsyncpa [#allocation3], 1
    %1844 = vsyncpa [#allocation5], 1

</llo_original>
